<compile_context>
chip_gen: v7x
topology: tpu7x:2x2x1
jax: 0.10.0
libtpu: 0.0.40
codegen_flags: <defaults>
</compile_context>

<pallas_src>
import functools

import jax
import jax.numpy as jnp
from jax.experimental import pallas as pl
from jax.experimental.pallas import tpu as pltpu

EPS = 1e-5
LANE = 128
SUBLANE = 8


def _round_up(x, m):
    return (x + m - 1) // m * m


def _pick_tm(m):
    """Row-tile size: big tiles amortize ~0.35us/step overhead (per-step VMEM is tiny);
    keep >=2 grid steps when M allows (megacore); multiple of 16 for bf16 packing."""
    tm = _round_up(max(m // 2, 1), 16)
    return max(16, min(1024, tm))


# ----------------------------- Pallas kernels ------------------------------ #
def _make_conv_stats_kernel(fuse_downsample: bool):
    """Pass 1: (tm,K)@(K,Cp) MXU matmul (f32 acc); write bf16 y tile + per-tile stats.

    When fuse_downsample, also runs the 1x1 downsample conv on the strided input tile
    and emits its raw bf16 output plus its stats rows (its BN is applied later, fused
    into conv2's pass-2 epilogue).  The stats slab is a full 8-sublane block per grid
    step (unmasked lane-dense stores, no resident accumulator -> "parallel" M axis).
    """

    def kernel(*refs):
        if fuse_downsample:
            p_ref, w_ref, pd_ref, wd_ref, y_ref, id_ref, stat_ref = refs
        else:
            p_ref, w_ref, y_ref, stat_ref = refs

        y = jnp.dot(p_ref[...], w_ref[...], preferred_element_type=jnp.float32)
        y_ref[...] = y.astype(y_ref.dtype)
        rows = [jnp.sum(y, axis=0, keepdims=True),          # per-channel sum
                jnp.sum(y * y, axis=0, keepdims=True)]      # per-channel sum of squares

        if fuse_downsample:
            idr = jnp.dot(pd_ref[...], wd_ref[...],
                          preferred_element_type=jnp.float32)
            id_ref[...] = idr.astype(id_ref.dtype)
            rows.append(jnp.sum(idr, axis=0, keepdims=True))
            rows.append(jnp.sum(idr * idr, axis=0, keepdims=True))

        cp = y.shape[1]
        rows.append(jnp.zeros((SUBLANE - len(rows), cp), jnp.float32))
        stat_ref[...] = jnp.concatenate(rows, axis=0)        # full 8-row slab

    return kernel


def _make_bn_act_kernel(has_residual: bool, residual_bn: bool, apply_relu: bool):
    """Pass 2: y*scale + bias (+ residual[*rscale + rbias]) (+ ReLU). f32 math, bf16 IO."""

    def kernel(*refs):
        if has_residual:
            y_ref, sb_ref, r_ref, o_ref = refs
        else:
            y_ref, sb_ref, o_ref = refs
            r_ref = None
        out = y_ref[...].astype(jnp.float32) * sb_ref[0:1, :] + sb_ref[1:2, :]
        if r_ref is not None:
            r = r_ref[...].astype(jnp.float32)
            if residual_bn:
                r = r * sb_ref[2:3, :] + sb_ref[3:4, :]
            out = out + r
        if apply_relu:
            out = jnp.maximum(out, 0.0)
        o_ref[...] = out.astype(o_ref.dtype)

    return kernel


# ------------------------------ pass wrappers ------------------------------- #
def _conv_pass1(patches, w_p, *, pd=None, wd_p=None, tm, cp):
    """Tiled conv-as-matmul + per-tile channel stats (+ fused 1x1 downsample conv).

    patches : (Mp, K) bf16 im2col rows (Mp multiple of tm).
    w_p     : (K, Cp) bf16, Cout zero-padded to Cp (multiple of 128).
    pd/wd_p : optional (Mp, Cin) / (Cin, Cp) bf16 for the fused 1x1 downsample conv.
    Returns (y_raw bf16 (Mp,Cp), id_raw bf16 or None, stats f32 (8,Cp)).
    """
    mp, k = patches.shape
    nt = mp // tm
    fuse = pd is not None

    inputs = [patches, w_p]
    in_specs = [pl.BlockSpec((tm, k), lambda i: (i, 0)),      # patch tile (bf16)
                pl.BlockSpec((k, cp), lambda i: (0, 0))]      # weights, resident
    out_shapes = [jax.ShapeDtypeStruct((mp, cp), jnp.bfloat16)]
    out_specs = [pl.BlockSpec((tm, cp), lambda i: (i, 0))]    # raw conv output (bf16)
    if fuse:
        kd = pd.shape[1]
        inputs += [pd, wd_p]
        in_specs += [pl.BlockSpec((tm, kd), lambda i: (i, 0)),
                     pl.BlockSpec((kd, cp), lambda i: (0, 0))]
        out_shapes.append(jax.ShapeDtypeStruct((mp, cp), jnp.bfloat16))
        out_specs.append(pl.BlockSpec((tm, cp), lambda i: (i, 0)))
    # per-tile partial stats: one 8-row lane-dense slab per grid step
    out_shapes.append(jax.ShapeDtypeStruct((nt * SUBLANE, cp), jnp.float32))
    out_specs.append(pl.BlockSpec((SUBLANE, cp), lambda i: (i, 0)))

    outs = pl.pallas_call(
        _make_conv_stats_kernel(fuse),
        out_shape=tuple(out_shapes),
        grid=(nt,),
        in_specs=in_specs,
        out_specs=tuple(out_specs),
        compiler_params=pltpu.CompilerParams(
            dimension_semantics=("parallel",)),   # no resident accumulator -> megacore OK
    )(*inputs)

    if fuse:
        y, id_raw, stats_tiles = outs
    else:
        y, stats_tiles = outs
        id_raw = None
    stats = stats_tiles.reshape(nt, SUBLANE, cp).sum(axis=0)   # tiny JAX reduction
    return y, id_raw, stats


def _bn_fold(s, q, gamma_p, beta_p, m):
    """Training-mode BN fold: per-channel scale/bias from sum and sum-of-squares."""
    mean = s / m                                  # padded zero rows contribute nothing
    var = jnp.maximum(q / m - mean * mean, 0.0)   # clamp one-pass variance
    scale = gamma_p * jax.lax.rsqrt(var + EPS)
    bias = beta_p - mean * scale
    return scale, bias


def _pack_sb(scale, bias, r_scale=None, r_bias=None):
    """Pack scale/bias (+ residual scale/bias) into one (8, Cp) lane-dense slab."""
    cp = scale.shape[0]
    rows = [scale, bias]
    if r_scale is not None:
        rows += [r_scale, r_bias]
    while len(rows) < SUBLANE:
        rows.append(jnp.zeros((cp,), jnp.float32))
    return jnp.stack(rows, axis=0)


def _bn_act_pass2(y, sb8, *, residual=None, residual_bn=False, relu=True,
                  out_dtype=jnp.bfloat16, tm):
    """Normalize (+ residual) (+ ReLU), tiled & parallel over M. All HBM I/O bf16."""
    mp, cp = y.shape
    inputs = [y, sb8]
    in_specs = [pl.BlockSpec((tm, cp), lambda i: (i, 0)),
                pl.BlockSpec((SUBLANE, cp), lambda i: (0, 0))]
    if residual is not None:
        inputs.append(residual)
        in_specs.append(pl.BlockSpec((tm, cp), lambda i: (i, 0)))
    return pl.pallas_call(
        _make_bn_act_kernel(residual is not None, residual_bn, relu),
        out_shape=jax.ShapeDtypeStruct((mp, cp), out_dtype),
        grid=(mp // tm,),
        in_specs=in_specs,
        out_specs=pl.BlockSpec((tm, cp), lambda i: (i, 0)),
        compiler_params=pltpu.CompilerParams(
            dimension_semantics=("parallel",)),
    )(*inputs)


# ------------------------------- glue (JAX) -------------------------------- #
def _im2col(x_nhwc, kh, kw, stride, padding):
    """Extract patches. Returns ((N*Ho*Wo, kh*kw*Cin), (N, Ho, Wo))."""
    x = jnp.pad(x_nhwc, ((0, 0), (padding, padding), (padding, padding), (0, 0)))
    n, hp, wp, c = x.shape
    ho = (hp - kh) // stride + 1
    wo = (wp - kw) // stride + 1
    cols = []
    for i in range(kh):
        for j in range(kw):
            cols.append(x[:, i:i + stride * ho:stride, j:j + stride * wo:stride, :])
    patches = jnp.concatenate(cols, axis=-1)  # (N, Ho, Wo, kh*kw*Cin)
    return patches.reshape(n * ho * wo, kh * kw * c), (n, ho, wo)


def _prep_w(w_oihw):
    """(Cout,Cin,kh,kw) -> (kh*kw*Cin, Cp) bf16, Cout padded to a 128 multiple."""
    cout, cin, kh, kw = w_oihw.shape
    k = kh * kw * cin
    w = jnp.transpose(w_oihw, (2, 3, 1, 0)).reshape(k, cout)
    cp = _round_up(cout, LANE)
    return jnp.pad(w.astype(jnp.bfloat16), ((0, 0), (0, cp - cout)))


def _prep_bn(g, b):
    cp = _round_up(g.shape[0], LANE)
    pad = (0, cp - g.shape[0])
    return (jnp.pad(g.astype(jnp.float32), pad),
            jnp.pad(b.astype(jnp.float32), pad))


def prepare_params(params, inplanes, planes):
    """One-time (outside-jit) weight flatten/cast/pad — no per-call astype copies."""
    prep = {
        "w1": _prep_w(params["conv1_w"]), "bn1": _prep_bn(params["bn1_g"], params["bn1_b"]),
        "w2": _prep_w(params["conv2_w"]), "bn2": _prep_bn(params["bn2_g"], params["bn2_b"]),
    }
    if inplanes != planes:  # matches the PyTorch module (expansion == 1)
        prep["wd"] = _prep_w(params["down_w"])
        prep["bnd"] = _prep_bn(params["bnd_g"], params["bnd_b"])
    return prep


def basic_block_forward(x_nchw, prep, inplanes, planes, stride):
    """Pallas implementation of BasicBlock.forward (input/output NCHW, f32)."""
    has_downsample = inplanes != planes
    if not has_downsample and stride != 1:
        # Same restriction as the PyTorch module: no downsample => residual needs stride 1.
        raise ValueError("no-downsample path requires stride == 1")

    x = jnp.transpose(x_nchw, (0, 2, 3, 1))           # -> NHWC
    x_bf16 = x.astype(jnp.bfloat16)                   # single cast; all MXU feeds bf16

    # conv1 (3x3, stride) patches
    p1, (n, ho, wo) = _im2col(x_bf16, 3, 3, stride, 1)
    m = n * ho * wo
    tm = _pick_tm(m)
    mp = _round_up(m, tm)
    cp = prep["w1"].shape[1]
    if mp != m:
        p1 = jnp.pad(p1, ((0, mp - m), (0, 0)))

    pd = None
    if has_downsample:
        # 1x1/stride downsample input = stride-sampled center tap of conv1's field.
        pd = x_bf16[:, ::stride, ::stride, :].reshape(m, inplanes)
        if mp != m:
            pd = jnp.pad(pd, ((0, mp - m), (0, 0)))

    # conv1 pass 1 (fused with 1x1 downsample conv when present) + stats
    y1, id_raw, stats1 = _conv_pass1(p1, prep["w1"], pd=pd,
                                     wd_p=prep.get("wd"), tm=tm, cp=cp)

    g1, b1 = prep["bn1"]
    sb1 = _pack_sb(*_bn_fold(stats1[0], stats1[1], g1, b1, m))
    out1 = _bn_act_pass2(y1, sb1, relu=True, out_dtype=jnp.bfloat16, tm=tm)
    out1_nhwc = out1[:m, :planes].reshape(n, ho, wo, planes)

    # identity / downsample path (downsample BN folded into conv2's epilogue)
    if has_downsample:
        gd, bd = prep["bnd"]
        d_scale, d_bias = _bn_fold(stats1[2], stats1[3], gd, bd, m)
        residual, residual_bn = id_raw, True
    else:
        residual = jnp.pad(x_bf16.reshape(m, inplanes),
                           ((0, mp - m), (0, cp - inplanes)))
        d_scale = d_bias = None
        residual_bn = False

    # conv2 (3x3, stride 1) + bn2 + residual add + relu2
    p2, _ = _im2col(out1_nhwc, 3, 3, 1, 1)
    if mp != m:
        p2 = jnp.pad(p2, ((0, mp - m), (0, 0)))
    y2, _, stats2 = _conv_pass1(p2, prep["w2"], tm=tm, cp=cp)
    g2, b2 = prep["bn2"]
    s2, bi2 = _bn_fold(stats2[0], stats2[1], g2, b2, m)
    sb2 = _pack_sb(s2, bi2, d_scale, d_bias)
    out2 = _bn_act_pass2(y2, sb2, residual=residual, residual_bn=residual_bn,
                         relu=True, out_dtype=jnp.bfloat16, tm=tm)

    out_nhwc = out2[:m, :planes].reshape(n, ho, wo, planes)
    return jnp.transpose(out_nhwc, (0, 3, 1, 2)).astype(jnp.float32)  # -> NCHW f32


# --------------------------- pure-JAX reference ----------------------------- #
def _ref_forward(x, params, inplanes, planes, stride):
    def conv(x, w, s, pad):
        return jax.lax.conv_general_dilated(
            x, w, (s, s), [(pad, pad), (pad, pad)],
            dimension_numbers=("NCHW", "OIHW", "NCHW"))

    def bn(y, g, b):
        mean = jnp.mean(y, axis=(0, 2, 3), keepdims=True)
        var = jnp.mean(jnp.square(y - mean), axis=(0, 2, 3), keepdims=True)
        return ((y - mean) * jax.lax.rsqrt(var + EPS)
                * g.reshape(1, -1, 1, 1) + b.reshape(1, -1, 1, 1))

    out = jnp.maximum(bn(conv(x, params["conv1_w"], stride, 1),
                         params["bn1_g"], params["bn1_b"]), 0.0)
    out = bn(conv(out, params["conv2_w"], 1, 1), params["bn2_g"], params["bn2_b"])
    if inplanes != planes:
        identity = bn(conv(x, params["down_w"], stride, 0),
                      params["bnd_g"], params["bnd_b"])
    else:
        identity = x
    return jnp.maximum(out + identity, 0.0)


# ---------------------------------- main ------------------------------------ #
if __name__ == "__main__":
    def make_params(keys, inplanes, planes, with_down):
        p = {
            "conv1_w": 0.1 * jax.random.normal(keys[0], (planes, inplanes, 3, 3), jnp.float32),
            "bn1_g": 1.0 + 0.1 * jax.random.normal(keys[1], (planes,), jnp.float32),
            "bn1_b": 0.1 * jax.random.normal(keys[2], (planes,), jnp.float32),
            "conv2_w": 0.1 * jax.random.normal(keys[3], (planes, planes, 3, 3), jnp.float32),
            "bn2_g": 1.0 + 0.1 * jax.random.normal(keys[4], (planes,), jnp.float32),
            "bn2_b": 0.1 * jax.random.normal(keys[5], (planes,), jnp.float32),
        }
        if with_down:
            p["down_w"] = 0.1 * jax.random.normal(keys[6], (planes, inplanes, 1, 1), jnp.float32)
            p["bnd_g"] = 1.0 + 0.1 * jax.random.normal(keys[7], (planes,), jnp.float32)
            p["bnd_b"] = 0.1 * jax.random.normal(keys[8], (planes,), jnp.float32)
        return p

    # Case 1: downsample block (inplanes != planes, stride 2) — fused 1x1 path.
    N, INPLANES, PLANES, H, W, STRIDE = 2, 4, 8, 16, 16, 2
    keys = jax.random.split(jax.random.PRNGKey(0), 10)
    params = make_params(keys, INPLANES, PLANES, True)
    x = jax.random.normal(keys[9], (N, INPLANES, H, W), jnp.float32)
    prep = prepare_params(params, INPLANES, PLANES)        # one-time weight prep (outside jit)
    fwd = jax.jit(functools.partial(basic_block_forward,
                                    inplanes=INPLANES, planes=PLANES, stride=STRIDE))
    out = jax.block_until_ready(fwd(x, prep))
    ref = _ref_forward(x, params, INPLANES, PLANES, STRIDE)
    assert out.shape == ref.shape == (N, PLANES, H // STRIDE, W // STRIDE), out.shape
    err1 = float(jnp.max(jnp.abs(out - ref)))
    # bf16 MXU feeds + bf16 intermediates (f32 accumulation / f32 BN) vs pure-f32 reference.
    assert jnp.allclose(out, ref, atol=5e-2, rtol=5e-2), err1

    # Case 2: identity block (inplanes == planes, stride 1) — plain residual path.
    keys2 = jax.random.split(jax.random.PRNGKey(1), 10)
    params2 = make_params(keys2, PLANES, PLANES, False)
    x2 = jax.random.normal(keys2[9], (N, PLANES, H, W), jnp.float32)
    prep2 = prepare_params(params2, PLANES, PLANES)
    fwd2 = jax.jit(functools.partial(basic_block_forward,
                                     inplanes=PLANES, planes=PLANES, stride=1))
    out2 = jax.block_until_ready(fwd2(x2, prep2))
    ref2 = _ref_forward(x2, params2, PLANES, PLANES, 1)
    assert out2.shape == ref2.shape == (N, PLANES, H, W), out2.shape
    err2 = float(jnp.max(jnp.abs(out2 - ref2)))
    assert jnp.allclose(out2, ref2, atol=5e-2, rtol=5e-2), err2

    print("KERNEL_OK")
</pallas_src>

<mosaic_0001>
module attributes {stable_mosaic.version = 11 : i64} {
  func.func @kernel(%arg0: i32, %arg1: memref<64x36xbf16, #tpu.memory_space<vmem>>, %arg2: memref<36x128xbf16, #tpu.memory_space<vmem>>, %arg3: memref<64x4xbf16, #tpu.memory_space<vmem>>, %arg4: memref<4x128xbf16, #tpu.memory_space<vmem>>, %arg5: memref<64x128xbf16, #tpu.memory_space<vmem>>, %arg6: memref<64x128xbf16, #tpu.memory_space<vmem>>, %arg7: memref<8x128xf32, #tpu.memory_space<vmem>>) attributes {dimension_semantics = [#tpu.dimension_semantics<parallel>], iteration_bounds = array<i64: 2>, scalar_prefetch = 0 : i64, scratch_operands = 0 : i64, tpu.core_type = #tpu.core_type<tc>, window_params = [{transform_indices = @transform_0, window_bounds = array<i64: 64, 36>}, {pipeline_mode = #tpu.pipeline_mode<synchronous>, transform_indices = @transform_1, window_bounds = array<i64: 36, 128>}, {transform_indices = @transform_2, window_bounds = array<i64: 64, 4>}, {pipeline_mode = #tpu.pipeline_mode<synchronous>, transform_indices = @transform_3, window_bounds = array<i64: 4, 128>}, {transform_indices = @transform_4, window_bounds = array<i64: 64, 128>}, {transform_indices = @transform_5, window_bounds = array<i64: 64, 128>}, {transform_indices = @transform_6, window_bounds = array<i64: 8, 128>}]} {
    %c0 = arith.constant 0 : index
    %c0_0 = arith.constant 0 : index
    %0 = vector.load %arg1[%c0, %c0_0] : memref<64x36xbf16, #tpu.memory_space<vmem>>, vector<64x36xbf16>
    %c0_1 = arith.constant 0 : index
    %c0_2 = arith.constant 0 : index
    %1 = vector.load %arg2[%c0_1, %c0_2] : memref<36x128xbf16, #tpu.memory_space<vmem>>, vector<36x128xbf16>
    %cst = arith.constant dense<0.000000e+00> : vector<64x128xf32>
    %2 = tpu.matmul %0, %1, %cst {dimension_numbers = #tpu.dot_dimension_numbers<[1], [0], [0], [1], [0, 0, 1, 1], [], []>} : vector<64x36xbf16>, vector<36x128xbf16>, vector<64x128xf32> -> vector<64x128xf32>
    %3 = arith.truncf %2 : vector<64x128xf32> to vector<64x128xbf16>
    %c0_3 = arith.constant 0 : index
    %c0_4 = arith.constant 0 : index
    %4 = vector.load %arg5[%c0_3, %c0_4] : memref<64x128xbf16, #tpu.memory_space<vmem>>, vector<64x128xbf16>
    tpu.vector_store %arg5[%c0_3, %c0_4], %3 {strides = array<i32>} : memref<64x128xbf16, #tpu.memory_space<vmem>>, vector<64x128xbf16>,
    %cst_5 = arith.constant dense<0.000000e+00> : vector<128xf32>
    %5 = vector.multi_reduction <add>, %2, %cst_5 [0] : vector<64x128xf32> to vector<128xf32>
    %6 = vector.shape_cast %5 : vector<128xf32> to vector<1x128xf32>
    %7 = arith.mulf %2, %2 : vector<64x128xf32>
    %cst_6 = arith.constant dense<0.000000e+00> : vector<128xf32>
    %8 = vector.multi_reduction <add>, %7, %cst_6 [0] : vector<64x128xf32> to vector<128xf32>
    %9 = vector.shape_cast %8 : vector<128xf32> to vector<1x128xf32>
    %c0_7 = arith.constant 0 : index
    %c0_8 = arith.constant 0 : index
    %10 = vector.load %arg3[%c0_7, %c0_8] : memref<64x4xbf16, #tpu.memory_space<vmem>>, vector<64x4xbf16>
    %c0_9 = arith.constant 0 : index
    %c0_10 = arith.constant 0 : index
    %11 = vector.load %arg4[%c0_9, %c0_10] : memref<4x128xbf16, #tpu.memory_space<vmem>>, vector<4x128xbf16>
    %cst_11 = arith.constant dense<0.000000e+00> : vector<64x128xf32>
    %12 = tpu.matmul %10, %11, %cst_11 {dimension_numbers = #tpu.dot_dimension_numbers<[1], [0], [0], [1], [0, 0, 1, 1], [], []>} : vector<64x4xbf16>, vector<4x128xbf16>, vector<64x128xf32> -> vector<64x128xf32>
    %13 = arith.truncf %12 : vector<64x128xf32> to vector<64x128xbf16>
    %c0_12 = arith.constant 0 : index
    %c0_13 = arith.constant 0 : index
    %14 = vector.load %arg6[%c0_12, %c0_13] : memref<64x128xbf16, #tpu.memory_space<vmem>>, vector<64x128xbf16>
    tpu.vector_store %arg6[%c0_12, %c0_13], %13 {strides = array<i32>} : memref<64x128xbf16, #tpu.memory_space<vmem>>, vector<64x128xbf16>,
    %cst_14 = arith.constant dense<0.000000e+00> : vector<128xf32>
    %15 = vector.multi_reduction <add>, %12, %cst_14 [0] : vector<64x128xf32> to vector<128xf32>
    %16 = vector.shape_cast %15 : vector<128xf32> to vector<1x128xf32>
    %17 = arith.mulf %12, %12 : vector<64x128xf32>
    %cst_15 = arith.constant dense<0.000000e+00> : vector<128xf32>
    %18 = vector.multi_reduction <add>, %17, %cst_15 [0] : vector<64x128xf32> to vector<128xf32>
    %19 = vector.shape_cast %18 : vector<128xf32> to vector<1x128xf32>
    %cst_16 = arith.constant 0.000000e+00 : f32
    %20 = vector.broadcast %cst_16 : f32 to vector<4x128xf32>
    %21 = tpu.concatenate %6, %9, %16, %19, %20 in 0 : vector<1x128xf32>, vector<1x128xf32>, vector<1x128xf32>, vector<1x128xf32>, vector<4x128xf32> -> vector<8x128xf32>
    %c0_17 = arith.constant 0 : index
    %c0_18 = arith.constant 0 : index
    %22 = vector.load %arg7[%c0_17, %c0_18] : memref<8x128xf32, #tpu.memory_space<vmem>>, vector<8x128xf32>
    tpu.vector_store %arg7[%c0_17, %c0_18], %21 {strides = array<i32>} : memref<8x128xf32, #tpu.memory_space<vmem>>, vector<8x128xf32>,
    return
  }
  func.func @transform_0(%arg0: i32) -> (i32, i32) {
    %c0_i32 = arith.constant 0 : i32
    %c0_i32_0 = arith.constant 0 : i32
    return %arg0, %c0_i32 : i32, i32
  }
  func.func @transform_1(%arg0: i32) -> (i32, i32) {
    %c0_i32 = arith.constant 0 : i32
    %c0_i32_0 = arith.constant 0 : i32
    %c0_i32_1 = arith.constant 0 : i32
    return %c0_i32, %c0_i32_0 : i32, i32
  }
  func.func @transform_2(%arg0: i32) -> (i32, i32) {
    %c0_i32 = arith.constant 0 : i32
    %c0_i32_0 = arith.constant 0 : i32
    return %arg0, %c0_i32 : i32, i32
  }
  func.func @transform_3(%arg0: i32) -> (i32, i32) {
    %c0_i32 = arith.constant 0 : i32
    %c0_i32_0 = arith.constant 0 : i32
    %c0_i32_1 = arith.constant 0 : i32
    return %c0_i32, %c0_i32_0 : i32, i32
  }
  func.func @transform_4(%arg0: i32) -> (i32, i32) {
    %c0_i32 = arith.constant 0 : i32
    %c0_i32_0 = arith.constant 0 : i32
    return %arg0, %c0_i32 : i32, i32
  }
  func.func @transform_5(%arg0: i32) -> (i32, i32) {
    %c0_i32 = arith.constant 0 : i32
    %c0_i32_0 = arith.constant 0 : i32
    return %arg0, %c0_i32 : i32, i32
  }
  func.func @transform_6(%arg0: i32) -> (i32, i32) {
    %c0_i32 = arith.constant 0 : i32
    %c0_i32_0 = arith.constant 0 : i32
    return %arg0, %c0_i32 : i32, i32
  }
}

module attributes {stable_mosaic.version = 11 : i64} {
  func.func @kernel(%arg0: i32, %arg1: memref<64x128xbf16, #tpu.memory_space<vmem>>, %arg2: memref<8x128xf32, #tpu.memory_space<vmem>>, %arg3: memref<64x128xbf16, #tpu.memory_space<vmem>>) attributes {dimension_semantics = [#tpu.dimension_semantics<parallel>], iteration_bounds = array<i64: 2>, scalar_prefetch = 0 : i64, scratch_operands = 0 : i64, tpu.core_type = #tpu.core_type<tc>, window_params = [{transform_indices = @transform_0, window_bounds = array<i64: 64, 128>}, {pipeline_mode = #tpu.pipeline_mode<synchronous>, transform_indices = @transform_1, window_bounds = array<i64: 8, 128>}, {transform_indices = @transform_2, window_bounds = array<i64: 64, 128>}]} {
    %c0 = arith.constant 0 : index
    %c0_0 = arith.constant 0 : index
    %0 = vector.load %arg1[%c0, %c0_0] : memref<64x128xbf16, #tpu.memory_space<vmem>>, vector<64x128xbf16>
    %1 = arith.extf %0 : vector<64x128xbf16> to vector<64x128xf32>
    %c0_1 = arith.constant 0 : index
    %c0_2 = arith.constant 0 : index
    %2 = vector.load %arg2[%c0_1, %c0_2] : memref<8x128xf32, #tpu.memory_space<vmem>>, vector<1x128xf32>
    %3 = vector.broadcast %2 : vector<1x128xf32> to vector<64x128xf32>
    %4 = arith.mulf %1, %3 : vector<64x128xf32>
    %c1 = arith.constant 1 : index
    %c0_3 = arith.constant 0 : index
    %5 = vector.load %arg2[%c1, %c0_3] : memref<8x128xf32, #tpu.memory_space<vmem>>, vector<1x128xf32>
    %6 = vector.broadcast %5 : vector<1x128xf32> to vector<64x128xf32>
    %7 = arith.addf %4, %6 : vector<64x128xf32>
    %cst = arith.constant 0.000000e+00 : f32
    %8 = vector.broadcast %cst : f32 to vector<64x128xf32>
    %9 = arith.maximumf %7, %8 : vector<64x128xf32>
    %10 = arith.truncf %9 : vector<64x128xf32> to vector<64x128xbf16>
    %c0_4 = arith.constant 0 : index
    %c0_5 = arith.constant 0 : index
    %11 = vector.load %arg3[%c0_4, %c0_5] : memref<64x128xbf16, #tpu.memory_space<vmem>>, vector<64x128xbf16>
    tpu.vector_store %arg3[%c0_4, %c0_5], %10 {strides = array<i32>} : memref<64x128xbf16, #tpu.memory_space<vmem>>, vector<64x128xbf16>,
    return
  }
  func.func @transform_0(%arg0: i32) -> (i32, i32) {
    %c0_i32 = arith.constant 0 : i32
    %c0_i32_0 = arith.constant 0 : i32
    return %arg0, %c0_i32 : i32, i32
  }
  func.func @transform_1(%arg0: i32) -> (i32, i32) {
    %c0_i32 = arith.constant 0 : i32
    %c0_i32_0 = arith.constant 0 : i32
    %c0_i32_1 = arith.constant 0 : i32
    return %c0_i32, %c0_i32_0 : i32, i32
  }
  func.func @transform_2(%arg0: i32) -> (i32, i32) {
    %c0_i32 = arith.constant 0 : i32
    %c0_i32_0 = arith.constant 0 : i32
    return %arg0, %c0_i32 : i32, i32
  }
}

module attributes {stable_mosaic.version = 11 : i64} {
  func.func @kernel(%arg0: i32, %arg1: memref<64x72xbf16, #tpu.memory_space<vmem>>, %arg2: memref<72x128xbf16, #tpu.memory_space<vmem>>, %arg3: memref<64x128xbf16, #tpu.memory_space<vmem>>, %arg4: memref<8x128xf32, #tpu.memory_space<vmem>>) attributes {dimension_semantics = [#tpu.dimension_semantics<parallel>], iteration_bounds = array<i64: 2>, scalar_prefetch = 0 : i64, scratch_operands = 0 : i64, tpu.core_type = #tpu.core_type<tc>, window_params = [{transform_indices = @transform_0, window_bounds = array<i64: 64, 72>}, {pipeline_mode = #tpu.pipeline_mode<synchronous>, transform_indices = @transform_1, window_bounds = array<i64: 72, 128>}, {transform_indices = @transform_2, window_bounds = array<i64: 64, 128>}, {transform_indices = @transform_3, window_bounds = array<i64: 8, 128>}]} {
    %c0 = arith.constant 0 : index
    %c0_0 = arith.constant 0 : index
    %0 = vector.load %arg1[%c0, %c0_0] : memref<64x72xbf16, #tpu.memory_space<vmem>>, vector<64x72xbf16>
    %c0_1 = arith.constant 0 : index
    %c0_2 = arith.constant 0 : index
    %1 = vector.load %arg2[%c0_1, %c0_2] : memref<72x128xbf16, #tpu.memory_space<vmem>>, vector<72x128xbf16>
    %cst = arith.constant dense<0.000000e+00> : vector<64x128xf32>
    %2 = tpu.matmul %0, %1, %cst {dimension_numbers = #tpu.dot_dimension_numbers<[1], [0], [0], [1], [0, 0, 1, 1], [], []>} : vector<64x72xbf16>, vector<72x128xbf16>, vector<64x128xf32> -> vector<64x128xf32>
    %3 = arith.truncf %2 : vector<64x128xf32> to vector<64x128xbf16>
    %c0_3 = arith.constant 0 : index
    %c0_4 = arith.constant 0 : index
    %4 = vector.load %arg3[%c0_3, %c0_4] : memref<64x128xbf16, #tpu.memory_space<vmem>>, vector<64x128xbf16>
    tpu.vector_store %arg3[%c0_3, %c0_4], %3 {strides = array<i32>} : memref<64x128xbf16, #tpu.memory_space<vmem>>, vector<64x128xbf16>,
    %cst_5 = arith.constant dense<0.000000e+00> : vector<128xf32>
    %5 = vector.multi_reduction <add>, %2, %cst_5 [0] : vector<64x128xf32> to vector<128xf32>
    %6 = vector.shape_cast %5 : vector<128xf32> to vector<1x128xf32>
    %7 = arith.mulf %2, %2 : vector<64x128xf32>
    %cst_6 = arith.constant dense<0.000000e+00> : vector<128xf32>
    %8 = vector.multi_reduction <add>, %7, %cst_6 [0] : vector<64x128xf32> to vector<128xf32>
    %9 = vector.shape_cast %8 : vector<128xf32> to vector<1x128xf32>
    %cst_7 = arith.constant 0.000000e+00 : f32
    %10 = vector.broadcast %cst_7 : f32 to vector<6x128xf32>
    %11 = tpu.concatenate %6, %9, %10 in 0 : vector<1x128xf32>, vector<1x128xf32>, vector<6x128xf32> -> vector<8x128xf32>
    %c0_8 = arith.constant 0 : index
    %c0_9 = arith.constant 0 : index
    %12 = vector.load %arg4[%c0_8, %c0_9] : memref<8x128xf32, #tpu.memory_space<vmem>>, vector<8x128xf32>
    tpu.vector_store %arg4[%c0_8, %c0_9], %11 {strides = array<i32>} : memref<8x128xf32, #tpu.memory_space<vmem>>, vector<8x128xf32>,
    return
  }
  func.func @transform_0(%arg0: i32) -> (i32, i32) {
    %c0_i32 = arith.constant 0 : i32
    %c0_i32_0 = arith.constant 0 : i32
    return %arg0, %c0_i32 : i32, i32
  }
  func.func @transform_1(%arg0: i32) -> (i32, i32) {
    %c0_i32 = arith.constant 0 : i32
    %c0_i32_0 = arith.constant 0 : i32
    %c0_i32_1 = arith.constant 0 : i32
    return %c0_i32, %c0_i32_0 : i32, i32
  }
  func.func @transform_2(%arg0: i32) -> (i32, i32) {
    %c0_i32 = arith.constant 0 : i32
    %c0_i32_0 = arith.constant 0 : i32
    return %arg0, %c0_i32 : i32, i32
  }
  func.func @transform_3(%arg0: i32) -> (i32, i32) {
    %c0_i32 = arith.constant 0 : i32
    %c0_i32_0 = arith.constant 0 : i32
    return %arg0, %c0_i32 : i32, i32
  }
}

module attributes {stable_mosaic.version = 11 : i64} {
  func.func @kernel(%arg0: i32, %arg1: memref<64x128xbf16, #tpu.memory_space<vmem>>, %arg2: memref<8x128xf32, #tpu.memory_space<vmem>>, %arg3: memref<64x128xbf16, #tpu.memory_space<vmem>>, %arg4: memref<64x128xbf16, #tpu.memory_space<vmem>>) attributes {dimension_semantics = [#tpu.dimension_semantics<parallel>], iteration_bounds = array<i64: 2>, scalar_prefetch = 0 : i64, scratch_operands = 0 : i64, tpu.core_type = #tpu.core_type<tc>, window_params = [{transform_indices = @transform_0, window_bounds = array<i64: 64, 128>}, {pipeline_mode = #tpu.pipeline_mode<synchronous>, transform_indices = @transform_1, window_bounds = array<i64: 8, 128>}, {transform_indices = @transform_2, window_bounds = array<i64: 64, 128>}, {transform_indices = @transform_3, window_bounds = array<i64: 64, 128>}]} {
    %c0 = arith.constant 0 : index
    %c0_0 = arith.constant 0 : index
    %0 = vector.load %arg1[%c0, %c0_0] : memref<64x128xbf16, #tpu.memory_space<vmem>>, vector<64x128xbf16>
    %1 = arith.extf %0 : vector<64x128xbf16> to vector<64x128xf32>
    %c0_1 = arith.constant 0 : index
    %c0_2 = arith.constant 0 : index
    %2 = vector.load %arg2[%c0_1, %c0_2] : memref<8x128xf32, #tpu.memory_space<vmem>>, vector<1x128xf32>
    %3 = vector.broadcast %2 : vector<1x128xf32> to vector<64x128xf32>
    %4 = arith.mulf %1, %3 : vector<64x128xf32>
    %c1 = arith.constant 1 : index
    %c0_3 = arith.constant 0 : index
    %5 = vector.load %arg2[%c1, %c0_3] : memref<8x128xf32, #tpu.memory_space<vmem>>, vector<1x128xf32>
    %6 = vector.broadcast %5 : vector<1x128xf32> to vector<64x128xf32>
    %7 = arith.addf %4, %6 : vector<64x128xf32>
    %c0_4 = arith.constant 0 : index
    %c0_5 = arith.constant 0 : index
    %8 = vector.load %arg3[%c0_4, %c0_5] : memref<64x128xbf16, #tpu.memory_space<vmem>>, vector<64x128xbf16>
    %9 = arith.extf %8 : vector<64x128xbf16> to vector<64x128xf32>
    %c2 = arith.constant 2 : index
    %c0_6 = arith.constant 0 : index
    %10 = vector.load %arg2[%c2, %c0_6] : memref<8x128xf32, #tpu.memory_space<vmem>>, vector<1x128xf32>
    %11 = vector.broadcast %10 : vector<1x128xf32> to vector<64x128xf32>
    %12 = arith.mulf %9, %11 : vector<64x128xf32>
    %c3 = arith.constant 3 : index
    %c0_7 = arith.constant 0 : index
    %13 = vector.load %arg2[%c3, %c0_7] : memref<8x128xf32, #tpu.memory_space<vmem>>, vector<1x128xf32>
    %14 = vector.broadcast %13 : vector<1x128xf32> to vector<64x128xf32>
    %15 = arith.addf %12, %14 : vector<64x128xf32>
    %16 = arith.addf %7, %15 : vector<64x128xf32>
    %cst = arith.constant 0.000000e+00 : f32
    %17 = vector.broadcast %cst : f32 to vector<64x128xf32>
    %18 = arith.maximumf %16, %17 : vector<64x128xf32>
    %19 = arith.truncf %18 : vector<64x128xf32> to vector<64x128xbf16>
    %c0_8 = arith.constant 0 : index
    %c0_9 = arith.constant 0 : index
    %20 = vector.load %arg4[%c0_8, %c0_9] : memref<64x128xbf16, #tpu.memory_space<vmem>>, vector<64x128xbf16>
    tpu.vector_store %arg4[%c0_8, %c0_9], %19 {strides = array<i32>} : memref<64x128xbf16, #tpu.memory_space<vmem>>, vector<64x128xbf16>,
    return
  }
  func.func @transform_0(%arg0: i32) -> (i32, i32) {
    %c0_i32 = arith.constant 0 : i32
    %c0_i32_0 = arith.constant 0 : i32
    return %arg0, %c0_i32 : i32, i32
  }
  func.func @transform_1(%arg0: i32) -> (i32, i32) {
    %c0_i32 = arith.constant 0 : i32
    %c0_i32_0 = arith.constant 0 : i32
    %c0_i32_1 = arith.constant 0 : i32
    return %c0_i32, %c0_i32_0 : i32, i32
  }
  func.func @transform_2(%arg0: i32) -> (i32, i32) {
    %c0_i32 = arith.constant 0 : i32
    %c0_i32_0 = arith.constant 0 : i32
    return %arg0, %c0_i32 : i32, i32
  }
  func.func @transform_3(%arg0: i32) -> (i32, i32) {
    %c0_i32 = arith.constant 0 : i32
    %c0_i32_0 = arith.constant 0 : i32
    return %arg0, %c0_i32 : i32, i32
  }
}

</mosaic_0001>

<llo_original>
// kernel: basic_block_forward.5
$region0: #{basic_block_forward.5}
  #allocation0 [shape = 'u32[]', space=smem, size = 0x4, offset = 0x4, fixed_abs, tag = 'smem constant byte address 0x4 - core index']
  #allocation1 [shape = 'u32[144,128]{1,0:T(1,128)}', space=vmem, size = 0x12000, scoped, tag = 'internal scratch']
  %s0 = inlined_call_operand.vmem [shape: bf16[128,128], index: 0, kind: input, shape index: {}]
  %s1 = inlined_call_operand.vmem [shape: f32[8,128], index: 1, kind: input, shape index: {}]
  %s2 = inlined_call_operand.vmem [shape: bf16[128,128], index: 2, kind: output, shape index: {}]
  %s3 = sld [smem:[#allocation0]]
  $region41: #{basic_block_forward.5} parent=0
    _
  %s5 = ssub.s32 1, %s3
  %s6 = scalar_select 0, %s5, %s3
  loop: start=0, step=1, limit=4
  $region2: #{basic_block_forward.5} parent=0 // loop_pre_header
    _
  $region3: #{basic_block_forward.5} parent=0 // loop_header
    %s8 = sphi 0, %s12
    %p9 = scmp.ge.s32.totalorder %s8, 4
    %s18 = sphi 0, %s20
    %s21 = sphi 0, %s18
    %s22 = sphi 0, %s21
    %s38 = sphi 0, %s22
    %s42 = sphi 0, %s42
    %s44 = sphi 0, %s42
    %s45 = sphi 0, %s44
    %s59 = sphi 0, %s45
    %s65 = sphi 0, %s67
    %s68 = sphi 0, %s65
    %s69 = sphi 0, %s68
    %s85 = sphi 0, %s69
  $region4: #{basic_block_forward.5} parent=0 // loop_header_branch
    %11 = sbr.rel (%p9) target = $region8
  $region5: #{basic_block_forward.5} parent=0 // loop_body
    %s13 = ssub.s32 %s8, 1
    %s14 = ssub.s32 %s8, 2
    %s15 = sadd.s32 %s8, 1
    %s16 = ssub.s32 %s8, %s15
    %p17 = scmp.eq.s32.totalorder %s16, 0
    %s19 = sadd.s32 %s18, 1
    %s20 = scalar_select %p17, %s18, %s19
    %p23 = pneg %p17
    %p24 = scmp.eq.s32.totalorder %s8, 1
    %p25 = por %p23, %p24
    %p26 = scmp.ne.s32.totalorder %s18, %s21
    %p27 = scmp.eq.s32.totalorder %s8, 0
    %p28 = por %p26, %p27
    %p29 = scmp.ne.s32.totalorder %s18, %s21
    %p30 = scmp.eq.s32.totalorder %s13, 1
    %p31 = por %p29, %p30
    %p32 = scmp.ne.s32.totalorder %s21, %s22
    %p33 = scmp.eq.s32.totalorder %s13, 0
    %p34 = por %p32, %p33
    %p35 = scmp.ne.s32.totalorder %s21, %s22
    %p36 = scmp.eq.s32.totalorder %s14, 1
    %p37 = por %p35, %p36
    %p39 = scmp.ne.s32.totalorder %s22, %s38
    %p40 = scmp.eq.s32.totalorder %s14, 0
    %p41 = por %p39, %p40
    %s43 = sadd.s32 %s42, 1
    %p46 = scmp.eq.s32.totalorder %s8, 1
    %p47 = scmp.ne.s32.totalorder %s42, %s44
    %p48 = scmp.eq.s32.totalorder %s8, 0
    %p49 = por %p47, %p48
    %p50 = scmp.ne.s32.totalorder %s42, %s44
    %p51 = scmp.eq.s32.totalorder %s13, 1
    %p52 = por %p50, %p51
    %p53 = scmp.ne.s32.totalorder %s44, %s45
    %p54 = scmp.eq.s32.totalorder %s13, 0
    %p55 = por %p53, %p54
    %p56 = scmp.ne.s32.totalorder %s44, %s45
    %p57 = scmp.eq.s32.totalorder %s14, 1
    %p58 = por %p56, %p57
    %p60 = scmp.ne.s32.totalorder %s45, %s59
    %p61 = scmp.eq.s32.totalorder %s14, 0
    %p62 = por %p60, %p61
    %s63 = ssub.s32 %s8, %s15
    %p64 = scmp.eq.s32.totalorder %s63, 0
    %s66 = sadd.s32 %s65, 1
    %s67 = scalar_select %p64, %s65, %s66
    %p70 = pneg %p64
    %p71 = scmp.eq.s32.totalorder %s8, 1
    %p72 = por %p70, %p71
    %p73 = scmp.ne.s32.totalorder %s65, %s68
    %p74 = scmp.eq.s32.totalorder %s8, 0
    %p75 = por %p73, %p74
    %p76 = scmp.ne.s32.totalorder %s65, %s68
    %p77 = scmp.eq.s32.totalorder %s13, 1
    %p78 = por %p76, %p77
    %p79 = scmp.ne.s32.totalorder %s68, %s69
    %p80 = scmp.eq.s32.totalorder %s13, 0
    %p81 = por %p79, %p80
    %p82 = scmp.ne.s32.totalorder %s68, %s69
    %p83 = scmp.eq.s32.totalorder %s14, 1
    %p84 = por %p82, %p83
    %p86 = scmp.ne.s32.totalorder %s69, %s85
    %p87 = scmp.eq.s32.totalorder %s14, 0
    %p88 = por %p86, %p87
    %p89 = scmp.le.s32.totalorder 1, %s8
    %p90 = scmp.lt.s32.totalorder %s8, 3
    %p91 = pnand %p89, %p90
    %p92 = pneg %p91
    // Predicated region
    $region9: #{basic_block_forward.5} parent=5 // pred_check
      _
    $region10: #{basic_block_forward.5} parent=5 // pred_check_branch
      %94 = sbr.rel (%p91) target = $region12
    $region11: #{basic_block_forward.5} parent=5 // pred_region
      %s95 = ssub.s32 %s8, 1
      // Predicated region
      $region13: #{basic_block_forward.5} parent=11 // pred_check
        %p96 = pneg %p55
      $region14: #{basic_block_forward.5} parent=11 // pred_check_branch
        %98 = sbr.rel (%p96) target = $region16
      $region15: #{basic_block_forward.5} parent=11 // pred_region
        _
      $region16: #{basic_block_forward.5} parent=11 // pred_fallthru
        _
    $region12: #{basic_block_forward.5} parent=5 // pred_fallthru
      _
    %p99 = scmp.lt.s32.totalorder %s8, 2
    // Predicated region
    $region17: #{basic_block_forward.5} parent=5 // pred_check
      %p100 = pneg %p99
    $region18: #{basic_block_forward.5} parent=5 // pred_check_branch
      %102 = sbr.rel (%p100) target = $region20
    $region19: #{basic_block_forward.5} parent=5 // pred_region
      // Predicated region
      $region21: #{basic_block_forward.5} parent=19 // pred_check
        %p103 = pneg %p28
      $region22: #{basic_block_forward.5} parent=19 // pred_check_branch
        %105 = sbr.rel (%p103) target = $region24
      $region23: #{basic_block_forward.5} parent=19 // pred_region
        %s106 = smul.u32 8, %s8
        %p107 = scmp.lt.s32.totalorder %s106, 15
        %s108 = scalar_select %p107, %s106, 15
        %s109 = smul.addr %s108, 4
        %s110 = scalar_lea.vmem %s0, %s109
        %s111 = smul.u32 8, %s8
      $region24: #{basic_block_forward.5} parent=19 // pred_fallthru
        _
    $region20: #{basic_block_forward.5} parent=5 // pred_fallthru
      _
    %p112 = scmp.le.s32.totalorder 1, %s8
    %p113 = scmp.lt.s32.totalorder %s8, 3
    %p114 = pnand %p112, %p113
    %p115 = pneg %p114
    // Predicated region
    $region25: #{basic_block_forward.5} parent=5 // pred_check
      _
    $region26: #{basic_block_forward.5} parent=5 // pred_check_branch
      %117 = sbr.rel (%p114) target = $region28
    $region27: #{basic_block_forward.5} parent=5 // pred_region
      %s118 = ssub.s32 %s8, 1
      %s119 = smul.u32 8, %s13
      %p120 = scmp.lt.s32.totalorder %s119, 15
      %s121 = scalar_select %p120, %s119, 15
      %s122 = smul.addr %s121, 4
      %s123 = scalar_lea.vmem %s0, %s122
      %p124 = pneg %p34
      %p125 = pneg %p31
      %p126 = pneg %p55
      %p127 = pneg %p52
      %p128 = pneg %p81
      %p129 = pneg %p78
      %s130 = smul.u32 8, %s13
      %p131 = scmp.lt.s32.totalorder %s130, 15
      %s132 = scalar_select %p131, %s130, 15
      %s133 = smul.addr %s132, 4
      %s134 = scalar_lea.vmem %s2, %s133
      %s135 = smul.u32 8, %s13
      %p136 = scmp.lt.s32.totalorder %s135, 15
      %s137 = scalar_select %p136, %s135, 15
      %s138 = smul.addr %s137, 4
      %s139 = scalar_lea.vmem %s0, %s138
      %s140 = smul.u32 8, %s13
      %s141 = smul.u32 8, %s13
      %p142 = scmp.lt.s32.totalorder %s141, 15
      %s143 = scalar_select %p142, %s141, 15
      %s144 = smul.addr %s143, 4
      %s145 = scalar_lea.vmem %s2, %s144
      %s146 = smul.u32 8, %s13
      %v147 = vld [vmem:[%s139] sm:$0xf]
      %v148 = vld [vmem:[%s139 + $0x4] sm:$0xf]
      %v149 = vld [vmem:[%s139 + $0x8] sm:$0xf]
      %v150 = vld [vmem:[%s139 + $0xc] sm:$0xf]
      %v151 = vld [vmem:[%s139 + $0x10] sm:$0xf]
      %v152 = vld [vmem:[%s139 + $0x14] sm:$0xf]
      %v153 = vld [vmem:[%s139 + $0x18] sm:$0xf]
      %v154 = vld [vmem:[%s139 + $0x1c] sm:$0xf]
      %v155 = vunpack.c.l.bf16 %v147
      %v156 = vunpack.c.l.bf16 %v148
      %v157 = vunpack.c.l.bf16 %v149
      %v158 = vunpack.c.l.bf16 %v150
      %v159 = vunpack.c.l.bf16 %v151
      %v160 = vunpack.c.l.bf16 %v152
      %v161 = vunpack.c.l.bf16 %v153
      %v162 = vunpack.c.l.bf16 %v154
      %v163 = vld [vmem:[%s1] sm:$0x1]
      %v164 = vlaneseq
      %v165 = vshrl.u32 %v164, 7
      %v166 = vsub.s32 0, %v165
      %v167 = vrot.slane %v163, %v166
      %v168 = vmul.f32 %v155, %v167
      %v169 = vmul.f32 %v156, %v167
      %v170 = vmul.f32 %v157, %v167
      %v171 = vmul.f32 %v158, %v167
      %v172 = vmul.f32 %v159, %v167
      %v173 = vmul.f32 %v160, %v167
      %v174 = vmul.f32 %v161, %v167
      %v175 = vmul.f32 %v162, %v167
      %v176 = vld [vmem:[%s1 + $0x1] sm:$0x1]
      %v177 = vlaneseq
      %v178 = vshrl.u32 %v177, 7
      %v179 = vsub.s32 0, %v178
      %v180 = vrot.slane %v176, %v179
      %v181 = vadd.f32 %v168, %v180
      %v182 = vadd.f32 %v169, %v180
      %v183 = vadd.f32 %v170, %v180
      %v184 = vadd.f32 %v171, %v180
      %v185 = vadd.f32 %v172, %v180
      %v186 = vadd.f32 %v173, %v180
      %v187 = vadd.f32 %v174, %v180
      %v188 = vadd.f32 %v175, %v180
      %v189 = vmax.f32 %v181, 0.0
      %v190 = vmax.f32 %v182, 0.0
      %v191 = vmax.f32 %v183, 0.0
      %v192 = vmax.f32 %v184, 0.0
      %v193 = vmax.f32 %v185, 0.0
      %v194 = vmax.f32 %v186, 0.0
      %v195 = vmax.f32 %v187, 0.0
      %v196 = vmax.f32 %v188, 0.0
      %v197 = vpack.c.bf16 %v190, %v189
      %v198 = vpack.c.bf16 %v192, %v191
      %v199 = vpack.c.bf16 %v194, %v193
      %v200 = vpack.c.bf16 %v196, %v195
      %v205 = vunpack.c.l.b16 %v197
      %v206 = vunpack.c.h.b16 %v197
      %v207 = vunpack.c.l.b16 %v198
      %v208 = vunpack.c.h.b16 %v198
      %v209 = vunpack.c.l.b16 %v199
      %v210 = vunpack.c.h.b16 %v199
      %v211 = vunpack.c.l.b16 %v200
      %v212 = vunpack.c.h.b16 %v200
      %v213 = vpack.c.b16 %v205, %v205
      %v214 = vpack.c.b16 %v206, %v206
      %v215 = vpack.c.b16 %v207, %v207
      %v216 = vpack.c.b16 %v208, %v208
      %v217 = vpack.c.b16 %v209, %v209
      %v218 = vpack.c.b16 %v210, %v210
      %v219 = vpack.c.b16 %v211, %v211
      %v220 = vpack.c.b16 %v212, %v212
      %229 = vst [vmem:[%s145] sm:$0xf] %v213
      %230 = vst [vmem:[%s145 + $0x4] sm:$0xf] %v214
      %231 = vst [vmem:[%s145 + $0x8] sm:$0xf] %v215
      %232 = vst [vmem:[%s145 + $0xc] sm:$0xf] %v216
      %233 = vst [vmem:[%s145 + $0x10] sm:$0xf] %v217
      %234 = vst [vmem:[%s145 + $0x14] sm:$0xf] %v218
      %235 = vst [vmem:[%s145 + $0x18] sm:$0xf] %v219
      %236 = vst [vmem:[%s145 + $0x1c] sm:$0xf] %v220
      %s237 = smul.u32 8, %s13
      %p238 = scmp.lt.s32.totalorder %s237, 15
      %s239 = scalar_select %p238, %s237, 15
      %s240 = smul.addr %s239, 4
      %s241 = scalar_lea.vmem %s2, %s240
      // Predicated region
      $region29: #{basic_block_forward.5} parent=27 // pred_check
        %p242 = pneg %p78
      $region30: #{basic_block_forward.5} parent=27 // pred_check_branch
        %244 = sbr.rel (%p242) target = $region32
      $region31: #{basic_block_forward.5} parent=27 // pred_region
        %s245 = smul.u32 8, %s13
      $region32: #{basic_block_forward.5} parent=27 // pred_fallthru
        _
    $region28: #{basic_block_forward.5} parent=5 // pred_fallthru
      _
    %p246 = scmp.le.s32.totalorder 2, %s8
    // Predicated region
    $region33: #{basic_block_forward.5} parent=5 // pred_check
      %p247 = pneg %p246
    $region34: #{basic_block_forward.5} parent=5 // pred_check_branch
      %249 = sbr.rel (%p247) target = $region36
    $region35: #{basic_block_forward.5} parent=5 // pred_region
      %s250 = ssub.s32 %s8, 2
      // Predicated region
      $region37: #{basic_block_forward.5} parent=35 // pred_check
        %p251 = pneg %p84
      $region38: #{basic_block_forward.5} parent=35 // pred_check_branch
        %253 = sbr.rel (%p251) target = $region40
      $region39: #{basic_block_forward.5} parent=35 // pred_region
        %s254 = smul.u32 8, %s14
        %p255 = scmp.lt.s32.totalorder %s254, 15
        %s256 = scalar_select %p255, %s254, 15
        %s257 = smul.addr %s256, 4
        %s258 = scalar_lea.vmem %s2, %s257
      $region40: #{basic_block_forward.5} parent=35 // pred_fallthru
        _
    $region36: #{basic_block_forward.5} parent=5 // pred_fallthru
      _
  $region6: #{basic_block_forward.5} parent=0 // loop_footer
    %s12 = sadd.s32 1, %s8
  $region7: #{basic_block_forward.5} parent=0 // loop_footer_branch
    %7 = sbr.rel target = $region3
  $region8: #{basic_block_forward.5} parent=0 // loop_exit
    _

// kernel: basic_block_forward.4
$region0: #{basic_block_forward.4}
  #allocation0 [shape = 'u32[]', space=smem, size = 0x4, offset = 0x4, fixed_abs, tag = 'smem constant byte address 0x4 - core index']
  #allocation1 [shape = 'u32[144,128]{1,0:T(1,128)}', space=vmem, size = 0x12000, scoped, tag = 'internal scratch']
  %s0 = inlined_call_operand.vmem [shape: bf16[128,36], index: 0, kind: input, shape index: {}]
  %s1 = inlined_call_operand.vmem [shape: bf16[36,128], index: 1, kind: input, shape index: {}]
  %s2 = inlined_call_operand.vmem [shape: bf16[128,4], index: 2, kind: input, shape index: {}]
  %s3 = inlined_call_operand.vmem [shape: bf16[4,128], index: 3, kind: input, shape index: {}]
  %s4 = inlined_call_operand.vmem [shape: bf16[128,128], index: 4, kind: output, shape index: {0}]
  %s5 = inlined_call_operand.vmem [shape: bf16[128,128], index: 5, kind: output, shape index: {1}]
  %s6 = inlined_call_operand.vmem [shape: f32[16,128], index: 6, kind: output, shape index: {2}]
  %7 = xla_tuple %s4, %s5, %s6
  %s8 = sld [smem:[#allocation0]]
  $region65: #{basic_block_forward.4} parent=0
    _
  %s10 = ssub.s32 1, %s8
  %s11 = scalar_select 0, %s10, %s8
  loop: start=0, step=1, limit=4
  $region2: #{basic_block_forward.4} parent=0 // loop_pre_header
    _
  $region3: #{basic_block_forward.4} parent=0 // loop_header
    %s13 = sphi 0, %s17
    %p14 = scmp.ge.s32.totalorder %s13, 4
    %s23 = sphi 0, %s25
    %s26 = sphi 0, %s23
    %s27 = sphi 0, %s26
    %s43 = sphi 0, %s27
    %s47 = sphi 0, %s47
    %s49 = sphi 0, %s47
    %s50 = sphi 0, %s49
    %s64 = sphi 0, %s50
    %s70 = sphi 0, %s72
    %s73 = sphi 0, %s70
    %s74 = sphi 0, %s73
    %s90 = sphi 0, %s74
    %s94 = sphi 0, %s94
    %s96 = sphi 0, %s94
    %s97 = sphi 0, %s96
    %s111 = sphi 0, %s97
    %s117 = sphi 0, %s119
    %s120 = sphi 0, %s117
    %s121 = sphi 0, %s120
    %s137 = sphi 0, %s121
    %s143 = sphi 0, %s145
    %s146 = sphi 0, %s143
    %s147 = sphi 0, %s146
    %s163 = sphi 0, %s147
    %s169 = sphi 0, %s171
    %s172 = sphi 0, %s169
    %s173 = sphi 0, %s172
    %s189 = sphi 0, %s173
  $region4: #{basic_block_forward.4} parent=0 // loop_header_branch
    %16 = sbr.rel (%p14) target = $region8
  $region5: #{basic_block_forward.4} parent=0 // loop_body
    %s18 = ssub.s32 %s13, 1
    %s19 = ssub.s32 %s13, 2
    %s20 = sadd.s32 %s13, 1
    %s21 = ssub.s32 %s13, %s20
    %p22 = scmp.eq.s32.totalorder %s21, 0
    %s24 = sadd.s32 %s23, 1
    %s25 = scalar_select %p22, %s23, %s24
    %p28 = pneg %p22
    %p29 = scmp.eq.s32.totalorder %s13, 1
    %p30 = por %p28, %p29
    %p31 = scmp.ne.s32.totalorder %s23, %s26
    %p32 = scmp.eq.s32.totalorder %s13, 0
    %p33 = por %p31, %p32
    %p34 = scmp.ne.s32.totalorder %s23, %s26
    %p35 = scmp.eq.s32.totalorder %s18, 1
    %p36 = por %p34, %p35
    %p37 = scmp.ne.s32.totalorder %s26, %s27
    %p38 = scmp.eq.s32.totalorder %s18, 0
    %p39 = por %p37, %p38
    %p40 = scmp.ne.s32.totalorder %s26, %s27
    %p41 = scmp.eq.s32.totalorder %s19, 1
    %p42 = por %p40, %p41
    %p44 = scmp.ne.s32.totalorder %s27, %s43
    %p45 = scmp.eq.s32.totalorder %s19, 0
    %p46 = por %p44, %p45
    %s48 = sadd.s32 %s47, 1
    %p51 = scmp.eq.s32.totalorder %s13, 1
    %p52 = scmp.ne.s32.totalorder %s47, %s49
    %p53 = scmp.eq.s32.totalorder %s13, 0
    %p54 = por %p52, %p53
    %p55 = scmp.ne.s32.totalorder %s47, %s49
    %p56 = scmp.eq.s32.totalorder %s18, 1
    %p57 = por %p55, %p56
    %p58 = scmp.ne.s32.totalorder %s49, %s50
    %p59 = scmp.eq.s32.totalorder %s18, 0
    %p60 = por %p58, %p59
    %p61 = scmp.ne.s32.totalorder %s49, %s50
    %p62 = scmp.eq.s32.totalorder %s19, 1
    %p63 = por %p61, %p62
    %p65 = scmp.ne.s32.totalorder %s50, %s64
    %p66 = scmp.eq.s32.totalorder %s19, 0
    %p67 = por %p65, %p66
    %s68 = ssub.s32 %s13, %s20
    %p69 = scmp.eq.s32.totalorder %s68, 0
    %s71 = sadd.s32 %s70, 1
    %s72 = scalar_select %p69, %s70, %s71
    %p75 = pneg %p69
    %p76 = scmp.eq.s32.totalorder %s13, 1
    %p77 = por %p75, %p76
    %p78 = scmp.ne.s32.totalorder %s70, %s73
    %p79 = scmp.eq.s32.totalorder %s13, 0
    %p80 = por %p78, %p79
    %p81 = scmp.ne.s32.totalorder %s70, %s73
    %p82 = scmp.eq.s32.totalorder %s18, 1
    %p83 = por %p81, %p82
    %p84 = scmp.ne.s32.totalorder %s73, %s74
    %p85 = scmp.eq.s32.totalorder %s18, 0
    %p86 = por %p84, %p85
    %p87 = scmp.ne.s32.totalorder %s73, %s74
    %p88 = scmp.eq.s32.totalorder %s19, 1
    %p89 = por %p87, %p88
    %p91 = scmp.ne.s32.totalorder %s74, %s90
    %p92 = scmp.eq.s32.totalorder %s19, 0
    %p93 = por %p91, %p92
    %s95 = sadd.s32 %s94, 1
    %p98 = scmp.eq.s32.totalorder %s13, 1
    %p99 = scmp.ne.s32.totalorder %s94, %s96
    %p100 = scmp.eq.s32.totalorder %s13, 0
    %p101 = por %p99, %p100
    %p102 = scmp.ne.s32.totalorder %s94, %s96
    %p103 = scmp.eq.s32.totalorder %s18, 1
    %p104 = por %p102, %p103
    %p105 = scmp.ne.s32.totalorder %s96, %s97
    %p106 = scmp.eq.s32.totalorder %s18, 0
    %p107 = por %p105, %p106
    %p108 = scmp.ne.s32.totalorder %s96, %s97
    %p109 = scmp.eq.s32.totalorder %s19, 1
    %p110 = por %p108, %p109
    %p112 = scmp.ne.s32.totalorder %s97, %s111
    %p113 = scmp.eq.s32.totalorder %s19, 0
    %p114 = por %p112, %p113
    %s115 = ssub.s32 %s13, %s20
    %p116 = scmp.eq.s32.totalorder %s115, 0
    %s118 = sadd.s32 %s117, 1
    %s119 = scalar_select %p116, %s117, %s118
    %p122 = pneg %p116
    %p123 = scmp.eq.s32.totalorder %s13, 1
    %p124 = por %p122, %p123
    %p125 = scmp.ne.s32.totalorder %s117, %s120
    %p126 = scmp.eq.s32.totalorder %s13, 0
    %p127 = por %p125, %p126
    %p128 = scmp.ne.s32.totalorder %s117, %s120
    %p129 = scmp.eq.s32.totalorder %s18, 1
    %p130 = por %p128, %p129
    %p131 = scmp.ne.s32.totalorder %s120, %s121
    %p132 = scmp.eq.s32.totalorder %s18, 0
    %p133 = por %p131, %p132
    %p134 = scmp.ne.s32.totalorder %s120, %s121
    %p135 = scmp.eq.s32.totalorder %s19, 1
    %p136 = por %p134, %p135
    %p138 = scmp.ne.s32.totalorder %s121, %s137
    %p139 = scmp.eq.s32.totalorder %s19, 0
    %p140 = por %p138, %p139
    %s141 = ssub.s32 %s13, %s20
    %p142 = scmp.eq.s32.totalorder %s141, 0
    %s144 = sadd.s32 %s143, 1
    %s145 = scalar_select %p142, %s143, %s144
    %p148 = pneg %p142
    %p149 = scmp.eq.s32.totalorder %s13, 1
    %p150 = por %p148, %p149
    %p151 = scmp.ne.s32.totalorder %s143, %s146
    %p152 = scmp.eq.s32.totalorder %s13, 0
    %p153 = por %p151, %p152
    %p154 = scmp.ne.s32.totalorder %s143, %s146
    %p155 = scmp.eq.s32.totalorder %s18, 1
    %p156 = por %p154, %p155
    %p157 = scmp.ne.s32.totalorder %s146, %s147
    %p158 = scmp.eq.s32.totalorder %s18, 0
    %p159 = por %p157, %p158
    %p160 = scmp.ne.s32.totalorder %s146, %s147
    %p161 = scmp.eq.s32.totalorder %s19, 1
    %p162 = por %p160, %p161
    %p164 = scmp.ne.s32.totalorder %s147, %s163
    %p165 = scmp.eq.s32.totalorder %s19, 0
    %p166 = por %p164, %p165
    %s167 = ssub.s32 %s13, %s20
    %p168 = scmp.eq.s32.totalorder %s167, 0
    %s170 = sadd.s32 %s169, 1
    %s171 = scalar_select %p168, %s169, %s170
    %p174 = pneg %p168
    %p175 = scmp.eq.s32.totalorder %s13, 1
    %p176 = por %p174, %p175
    %p177 = scmp.ne.s32.totalorder %s169, %s172
    %p178 = scmp.eq.s32.totalorder %s13, 0
    %p179 = por %p177, %p178
    %p180 = scmp.ne.s32.totalorder %s169, %s172
    %p181 = scmp.eq.s32.totalorder %s18, 1
    %p182 = por %p180, %p181
    %p183 = scmp.ne.s32.totalorder %s172, %s173
    %p184 = scmp.eq.s32.totalorder %s18, 0
    %p185 = por %p183, %p184
    %p186 = scmp.ne.s32.totalorder %s172, %s173
    %p187 = scmp.eq.s32.totalorder %s19, 1
    %p188 = por %p186, %p187
    %p190 = scmp.ne.s32.totalorder %s173, %s189
    %p191 = scmp.eq.s32.totalorder %s19, 0
    %p192 = por %p190, %p191
    %p193 = scmp.le.s32.totalorder 1, %s13
    %p194 = scmp.lt.s32.totalorder %s13, 3
    %p195 = pnand %p193, %p194
    %p196 = pneg %p195
    // Predicated region
    $region9: #{basic_block_forward.4} parent=5 // pred_check
      _
    $region10: #{basic_block_forward.4} parent=5 // pred_check_branch
      %198 = sbr.rel (%p195) target = $region12
    $region11: #{basic_block_forward.4} parent=5 // pred_region
      %s199 = ssub.s32 %s13, 1
      // Predicated region
      $region13: #{basic_block_forward.4} parent=11 // pred_check
        %p200 = pneg %p60
      $region14: #{basic_block_forward.4} parent=11 // pred_check_branch
        %202 = sbr.rel (%p200) target = $region16
      $region15: #{basic_block_forward.4} parent=11 // pred_region
        _
      $region16: #{basic_block_forward.4} parent=11 // pred_fallthru
        _
      // Predicated region
      $region17: #{basic_block_forward.4} parent=11 // pred_check
        %p203 = pneg %p107
      $region18: #{basic_block_forward.4} parent=11 // pred_check_branch
        %205 = sbr.rel (%p203) target = $region20
      $region19: #{basic_block_forward.4} parent=11 // pred_region
        _
      $region20: #{basic_block_forward.4} parent=11 // pred_fallthru
        _
    $region12: #{basic_block_forward.4} parent=5 // pred_fallthru
      _
    %p206 = scmp.lt.s32.totalorder %s13, 2
    // Predicated region
    $region21: #{basic_block_forward.4} parent=5 // pred_check
      %p207 = pneg %p206
    $region22: #{basic_block_forward.4} parent=5 // pred_check_branch
      %209 = sbr.rel (%p207) target = $region24
    $region23: #{basic_block_forward.4} parent=5 // pred_region
      // Predicated region
      $region25: #{basic_block_forward.4} parent=23 // pred_check
        %p210 = pneg %p33
      $region26: #{basic_block_forward.4} parent=23 // pred_check_branch
        %212 = sbr.rel (%p210) target = $region28
      $region27: #{basic_block_forward.4} parent=23 // pred_region
        %s213 = smul.u32 8, %s13
        %p214 = scmp.lt.s32.totalorder %s213, 15
        %s215 = scalar_select %p214, %s213, 15
        %s216 = smul.addr %s215, 4
        %s217 = scalar_lea.vmem %s0, %s216
        %s218 = smul.u32 8, %s13
      $region28: #{basic_block_forward.4} parent=23 // pred_fallthru
        _
      // Predicated region
      $region29: #{basic_block_forward.4} parent=23 // pred_check
        %p219 = pneg %p80
      $region30: #{basic_block_forward.4} parent=23 // pred_check_branch
        %221 = sbr.rel (%p219) target = $region32
      $region31: #{basic_block_forward.4} parent=23 // pred_region
        %s222 = smul.u32 8, %s13
        %p223 = scmp.lt.s32.totalorder %s222, 15
        %s224 = scalar_select %p223, %s222, 15
        %s225 = smul.addr %s224, 4
        %s226 = scalar_lea.vmem %s2, %s225
        %s227 = smul.u32 8, %s13
      $region32: #{basic_block_forward.4} parent=23 // pred_fallthru
        _
    $region24: #{basic_block_forward.4} parent=5 // pred_fallthru
      _
    %p228 = scmp.le.s32.totalorder 1, %s13
    %p229 = scmp.lt.s32.totalorder %s13, 3
    %p230 = pnand %p228, %p229
    %p231 = pneg %p230
    // Predicated region
    $region33: #{basic_block_forward.4} parent=5 // pred_check
      _
    $region34: #{basic_block_forward.4} parent=5 // pred_check_branch
      %233 = sbr.rel (%p230) target = $region36
    $region35: #{basic_block_forward.4} parent=5 // pred_region
      %s234 = ssub.s32 %s13, 1
      %s235 = smul.u32 8, %s18
      %p236 = scmp.lt.s32.totalorder %s235, 15
      %s237 = scalar_select %p236, %s235, 15
      %s238 = smul.addr %s237, 4
      %s239 = scalar_lea.vmem %s0, %s238
      %p240 = pneg %p39
      %p241 = pneg %p36
      %p242 = pneg %p60
      %p243 = pneg %p57
      %s244 = smul.u32 8, %s18
      %p245 = scmp.lt.s32.totalorder %s244, 15
      %s246 = scalar_select %p245, %s244, 15
      %s247 = smul.addr %s246, 4
      %s248 = scalar_lea.vmem %s2, %s247
      %p249 = pneg %p86
      %p250 = pneg %p83
      %p251 = pneg %p107
      %p252 = pneg %p104
      %p253 = pneg %p133
      %p254 = pneg %p130
      %s255 = smul.u32 8, %s18
      %p256 = scmp.lt.s32.totalorder %s255, 15
      %s257 = scalar_select %p256, %s255, 15
      %s258 = smul.addr %s257, 4
      %s259 = scalar_lea.vmem %s4, %s258
      %p260 = pneg %p159
      %p261 = pneg %p156
      %s262 = smul.u32 8, %s18
      %p263 = scmp.lt.s32.totalorder %s262, 15
      %s264 = scalar_select %p263, %s262, 15
      %s265 = smul.addr %s264, 4
      %s266 = scalar_lea.vmem %s5, %s265
      %p267 = pneg %p185
      %p268 = pneg %p182
      %p269 = scmp.lt.s32.totalorder %s18, 1
      %s270 = scalar_select %p269, %s18, 1
      %s271 = smul.addr %s270, 8
      %s272 = scalar_lea.vmem %s6, %s271
      %s273 = smul.u32 8, %s18
      %p274 = scmp.lt.s32.totalorder %s273, 15
      %s275 = scalar_select %p274, %s273, 15
      %s276 = smul.addr %s275, 4
      %s277 = scalar_lea.vmem %s0, %s276
      %s278 = smul.u32 8, %s18
      %s279 = smul.u32 8, %s18
      %p280 = scmp.lt.s32.totalorder %s279, 15
      %s281 = scalar_select %p280, %s279, 15
      %s282 = smul.addr %s281, 4
      %s283 = scalar_lea.vmem %s2, %s282
      %s284 = smul.u32 8, %s18
      %s285 = smul.u32 8, %s18
      %p286 = scmp.lt.s32.totalorder %s285, 15
      %s287 = scalar_select %p286, %s285, 15
      %s288 = smul.addr %s287, 4
      %s289 = scalar_lea.vmem %s4, %s288
      %s290 = smul.u32 8, %s18
      %s291 = smul.u32 8, %s18
      %p292 = scmp.lt.s32.totalorder %s291, 15
      %s293 = scalar_select %p292, %s291, 15
      %s294 = smul.addr %s293, 4
      %s295 = scalar_lea.vmem %s5, %s294
      %s296 = smul.u32 8, %s18
      %p297 = scmp.lt.s32.totalorder %s18, 1
      %s298 = scalar_select %p297, %s18, 1
      %s299 = smul.addr %s298, 8
      %s300 = scalar_lea.vmem %s6, %s299
      %v302 = vld [vmem:[%s277] sm:$0xf]
      %v303 = vld [vmem:[%s277 + $0x4] sm:$0xf]
      %v304 = vld [vmem:[%s277 + $0x8] sm:$0xf]
      %v305 = vld [vmem:[%s277 + $0xc] sm:$0xf]
      %v306 = vld [vmem:[%s277 + $0x10] sm:$0xf]
      %v307 = vld [vmem:[%s277 + $0x14] sm:$0xf]
      %v308 = vld [vmem:[%s277 + $0x18] sm:$0xf]
      %v309 = vld [vmem:[%s277 + $0x1c] sm:$0xf]
      %v310 = vld [vmem:[%s1] sm:$0xf]
      %v311 = vld [vmem:[%s1 + $0x4] sm:$0xf]
      %v312 = vld [vmem:[%s1 + $0x8] sm:$0xf]
      %v313 = vld [vmem:[%s1 + $0xc] sm:$0xf]
      %v314 = vld [vmem:[%s1 + $0x10] sm:$0x3]
      %v323 = vunpack.c.l.b16 %v302
      %v324 = vunpack.c.l.b16 %v303
      %v325 = vunpack.c.l.b16 %v304
      %v326 = vunpack.c.l.b16 %v305
      %v327 = vunpack.c.l.b16 %v306
      %v328 = vunpack.c.l.b16 %v307
      %v329 = vunpack.c.l.b16 %v308
      %v330 = vunpack.c.l.b16 %v309
      %v331 = vpack.c.b16 %v324, %v323
      %v332 = vpack.c.b16 %v326, %v325
      %v333 = vpack.c.b16 %v328, %v327
      %v334 = vpack.c.b16 %v330, %v329
      %v340 = vunpack.c.l.b16 %v310
      %v341 = vunpack.c.l.b16 %v311
      %v342 = vunpack.c.l.b16 %v312
      %v343 = vunpack.c.l.b16 %v313
      %v344 = vunpack.c.l.b16 %v314
      %v345 = vpack.c.b16 %v341, %v340
      %v346 = vpack.c.b16 %v343, %v342
      %v347 = vpack.c.b16 %v344, %v344
      %vm350 = vcmask 293888
      %v352 = vsel %vm350, %v331, 0
      %v355 = vsel %vm350, %v332, 0
      %v358 = vsel %vm350, %v333, 0
      %v361 = vsel %vm350, %v334, 0
      %vm363 = vcmask 1041408
      %v365 = vsel %vm363, %v347, 0
      %367 = vmatprep.subr.bf16.mxu0 0
      %368 = vmatpush1.bf16.msra.mxu0 %v345
      %369 = vmatprep.subr.bf16.mxu0 0
      %370 = vmatpush1.bf16.msra.mxu0 %v346
      %371 = vmatprep.subr.bf16.mxu0 0
      %372 = vmatpush1.bf16.msra.mxu0 %v365
      %373 = vmatprep.subr.bf16.mxu0 0
      %374 = vmatpush1.bf16.msra.mxu0 0
      %375 = vmatprep.subr.bf16.mxu0 0
      %376 = vmatpush1.bf16.msra.mxu0 0
      %377 = vmatprep.subr.bf16.mxu0 0
      %378 = vmatpush1.bf16.msra.mxu0 0
      %379 = vmatprep.subr.bf16.mxu0 0
      %380 = vmatpush1.bf16.msra.mxu0 0
      %381 = vmatprep.subr.bf16.mxu0 0
      %382 = vmatpush1.bf16.msra.mxu0 0
      %383 = vmatprep.subr.bf16.mxu0 0
      %384 = vmatpush1.bf16.msra.mxu0 0
      %385 = vmatprep.subr.bf16.mxu0 0
      %386 = vmatpush1.bf16.msra.mxu0 0
      %387 = vmatprep.subr.bf16.mxu0 0
      %388 = vmatpush1.bf16.msra.mxu0 0
      %389 = vmatprep.subr.bf16.mxu0 0
      %390 = vmatpush1.bf16.msra.mxu0 0
      %391 = vmatprep.subr.bf16.mxu0 0
      %392 = vmatpush1.bf16.msra.mxu0 0
      %393 = vmatprep.subr.bf16.mxu0 0
      %394 = vmatpush1.bf16.msra.mxu0 0
      %395 = vmatprep.subr.bf16.mxu0 0
      %396 = vmatpush1.bf16.msra.mxu0 0
      %397 = vmatprep.subr.bf16.mxu0 0
      %398 = vmatpush1.bf16.msra.mxu0 0
      %399 = vmatprep.mubr.bf16.mxu0 0
      %400 = vmatmul.mubr.bf16.gmra.mrb[0].mxu0 %v352
      %v401 = vpop.f32.mrb[0].mxu0
      %v402 = vadd.f32 0.0, %v401
      %v403 = vpop.f32.mrb[0].mxu0
      %v404 = vpop.f32.mrb[0].mxu0
      %v405 = vadd.f32 0.0, %v404
      %v406 = vpop.f32.mrb[0].mxu0
      %407 = vmatprep.mubr.bf16.mxu0 0
      %408 = vmatmul.mubr.bf16.gmra.mrb[0].mxu0 %v355
      %v409 = vpop.f32.mrb[0].mxu0
      %v410 = vadd.f32 0.0, %v409
      %v411 = vpop.f32.mrb[0].mxu0
      %v412 = vpop.f32.mrb[0].mxu0
      %v413 = vadd.f32 0.0, %v412
      %v414 = vpop.f32.mrb[0].mxu0
      %415 = vmatprep.mubr.bf16.mxu0 0
      %416 = vmatmul.mubr.bf16.gmra.mrb[0].mxu0 %v358
      %v417 = vpop.f32.mrb[0].mxu0
      %v418 = vadd.f32 0.0, %v417
      %v419 = vpop.f32.mrb[0].mxu0
      %v420 = vpop.f32.mrb[0].mxu0
      %v421 = vadd.f32 0.0, %v420
      %v422 = vpop.f32.mrb[0].mxu0
      %423 = vmatprep.mubr.bf16.mxu0 0
      %424 = vmatmul.mubr.bf16.gmra.mrb[0].mxu0 %v361
      %v425 = vpop.f32.mrb[0].mxu0
      %v426 = vadd.f32 0.0, %v425
      %v427 = vpop.f32.mrb[0].mxu0
      %v428 = vpop.f32.mrb[0].mxu0
      %v429 = vadd.f32 0.0, %v428
      %v430 = vpop.f32.mrb[0].mxu0
      %431 = vdwg.mxu0
      %v432 = vpack.c.bf16 %v405, %v402
      %v433 = vpack.c.bf16 %v413, %v410
      %v434 = vpack.c.bf16 %v421, %v418
      %v435 = vpack.c.bf16 %v429, %v426
      %v440 = vunpack.c.l.b16 %v432
      %v441 = vunpack.c.h.b16 %v432
      %v442 = vunpack.c.l.b16 %v433
      %v443 = vunpack.c.h.b16 %v433
      %v444 = vunpack.c.l.b16 %v434
      %v445 = vunpack.c.h.b16 %v434
      %v446 = vunpack.c.l.b16 %v435
      %v447 = vunpack.c.h.b16 %v435
      %v448 = vpack.c.b16 %v440, %v440
      %v449 = vpack.c.b16 %v441, %v441
      %v450 = vpack.c.b16 %v442, %v442
      %v451 = vpack.c.b16 %v443, %v443
      %v452 = vpack.c.b16 %v444, %v444
      %v453 = vpack.c.b16 %v445, %v445
      %v454 = vpack.c.b16 %v446, %v446
      %v455 = vpack.c.b16 %v447, %v447
      %464 = vst [vmem:[%s289] sm:$0xf] %v448
      %465 = vst [vmem:[%s289 + $0x4] sm:$0xf] %v449
      %466 = vst [vmem:[%s289 + $0x8] sm:$0xf] %v450
      %467 = vst [vmem:[%s289 + $0xc] sm:$0xf] %v451
      %468 = vst [vmem:[%s289 + $0x10] sm:$0xf] %v452
      %469 = vst [vmem:[%s289 + $0x14] sm:$0xf] %v453
      %470 = vst [vmem:[%s289 + $0x18] sm:$0xf] %v454
      %471 = vst [vmem:[%s289 + $0x1c] sm:$0xf] %v455
      %v472 = vadd.f32 %v402, %v405
      %v473 = vadd.f32 %v472, %v410
      %v474 = vadd.f32 %v473, %v413
      %v475 = vadd.f32 %v474, %v418
      %v476 = vadd.f32 %v475, %v421
      %v477 = vadd.f32 %v476, %v426
      %v478 = vadd.f32 %v477, %v429
      %v479 = vrot.slane %v478, 4
      %v480 = vadd.f32 %v478, %v479
      %v481 = vrot.slane %v480, 2
      %v482 = vadd.f32 %v480, %v481
      %v483 = vrot.slane %v482, 1
      %v484 = vadd.f32 %v482, %v483
      %v485 = vmul.f32 %v402, %v402
      %v486 = vmul.f32 %v405, %v405
      %v487 = vmul.f32 %v410, %v410
      %v488 = vmul.f32 %v413, %v413
      %v489 = vmul.f32 %v418, %v418
      %v490 = vmul.f32 %v421, %v421
      %v491 = vmul.f32 %v426, %v426
      %v492 = vmul.f32 %v429, %v429
      %v493 = vadd.f32 %v485, %v486
      %v494 = vadd.f32 %v493, %v487
      %v495 = vadd.f32 %v494, %v488
      %v496 = vadd.f32 %v495, %v489
      %v497 = vadd.f32 %v496, %v490
      %v498 = vadd.f32 %v497, %v491
      %v499 = vadd.f32 %v498, %v492
      %v500 = vrot.slane %v499, 4
      %v501 = vadd.f32 %v499, %v500
      %v502 = vrot.slane %v501, 2
      %v503 = vadd.f32 %v501, %v502
      %v504 = vrot.slane %v503, 1
      %v505 = vadd.f32 %v503, %v504
      %v506 = vld [vmem:[%s283] sm:$0xf]
      %v507 = vld [vmem:[%s283 + $0x4] sm:$0xf]
      %v508 = vld [vmem:[%s283 + $0x8] sm:$0xf]
      %v509 = vld [vmem:[%s283 + $0xc] sm:$0xf]
      %v510 = vld [vmem:[%s283 + $0x10] sm:$0xf]
      %v511 = vld [vmem:[%s283 + $0x14] sm:$0xf]
      %v512 = vld [vmem:[%s283 + $0x18] sm:$0xf]
      %v513 = vld [vmem:[%s283 + $0x1c] sm:$0xf]
      %v514 = vld [vmem:[%s3] sm:$0x3]
      %v523 = vunpack.c.l.b16 %v506
      %v524 = vunpack.c.l.b16 %v507
      %v525 = vunpack.c.l.b16 %v508
      %v526 = vunpack.c.l.b16 %v509
      %v527 = vunpack.c.l.b16 %v510
      %v528 = vunpack.c.l.b16 %v511
      %v529 = vunpack.c.l.b16 %v512
      %v530 = vunpack.c.l.b16 %v513
      %v531 = vpack.c.b16 %v524, %v523
      %v532 = vpack.c.b16 %v526, %v525
      %v533 = vpack.c.b16 %v528, %v527
      %v534 = vpack.c.b16 %v530, %v529
      %vm535 = vcmask 31744
      %v537 = vsel %vm535, %v531, 0
      %v540 = vsel %vm535, %v532, 0
      %v543 = vsel %vm535, %v533, 0
      %v546 = vsel %vm535, %v534, 0
      %v549 = vsel %vm363, %v514, 0
      %551 = vmatprep.subr.bf16.mxu0 0
      %552 = vmatpush1.bf16.msra.mxu0 %v549
      %553 = vmatprep.subr.bf16.mxu0 0
      %554 = vmatpush1.bf16.msra.mxu0 0
      %555 = vmatprep.subr.bf16.mxu0 0
      %556 = vmatpush1.bf16.msra.mxu0 0
      %557 = vmatprep.subr.bf16.mxu0 0
      %558 = vmatpush1.bf16.msra.mxu0 0
      %559 = vmatprep.subr.bf16.mxu0 0
      %560 = vmatpush1.bf16.msra.mxu0 0
      %561 = vmatprep.subr.bf16.mxu0 0
      %562 = vmatpush1.bf16.msra.mxu0 0
      %563 = vmatprep.subr.bf16.mxu0 0
      %564 = vmatpush1.bf16.msra.mxu0 0
      %565 = vmatprep.subr.bf16.mxu0 0
      %566 = vmatpush1.bf16.msra.mxu0 0
      %567 = vmatprep.subr.bf16.mxu0 0
      %568 = vmatpush1.bf16.msra.mxu0 0
      %569 = vmatprep.subr.bf16.mxu0 0
      %570 = vmatpush1.bf16.msra.mxu0 0
      %571 = vmatprep.subr.bf16.mxu0 0
      %572 = vmatpush1.bf16.msra.mxu0 0
      %573 = vmatprep.subr.bf16.mxu0 0
      %574 = vmatpush1.bf16.msra.mxu0 0
      %575 = vmatprep.subr.bf16.mxu0 0
      %576 = vmatpush1.bf16.msra.mxu0 0
      %577 = vmatprep.subr.bf16.mxu0 0
      %578 = vmatpush1.bf16.msra.mxu0 0
      %579 = vmatprep.subr.bf16.mxu0 0
      %580 = vmatpush1.bf16.msra.mxu0 0
      %581 = vmatprep.subr.bf16.mxu0 0
      %582 = vmatpush1.bf16.msra.mxu0 0
      %583 = vmatprep.mubr.bf16.mxu0 0
      %584 = vmatmul.mubr.bf16.gmra.mrb[0].mxu0 %v537
      %v585 = vpop.f32.mrb[0].mxu0
      %v586 = vadd.f32 0.0, %v585
      %v587 = vpop.f32.mrb[0].mxu0
      %v588 = vpop.f32.mrb[0].mxu0
      %v589 = vadd.f32 0.0, %v588
      %v590 = vpop.f32.mrb[0].mxu0
      %591 = vmatprep.mubr.bf16.mxu0 0
      %592 = vmatmul.mubr.bf16.gmra.mrb[0].mxu0 %v540
      %v593 = vpop.f32.mrb[0].mxu0
      %v594 = vadd.f32 0.0, %v593
      %v595 = vpop.f32.mrb[0].mxu0
      %v596 = vpop.f32.mrb[0].mxu0
      %v597 = vadd.f32 0.0, %v596
      %v598 = vpop.f32.mrb[0].mxu0
      %599 = vmatprep.mubr.bf16.mxu0 0
      %600 = vmatmul.mubr.bf16.gmra.mrb[0].mxu0 %v543
      %v601 = vpop.f32.mrb[0].mxu0
      %v602 = vadd.f32 0.0, %v601
      %v603 = vpop.f32.mrb[0].mxu0
      %v604 = vpop.f32.mrb[0].mxu0
      %v605 = vadd.f32 0.0, %v604
      %v606 = vpop.f32.mrb[0].mxu0
      %607 = vmatprep.mubr.bf16.mxu0 0
      %608 = vmatmul.mubr.bf16.gmra.mrb[0].mxu0 %v546
      %v609 = vpop.f32.mrb[0].mxu0
      %v610 = vadd.f32 0.0, %v609
      %v611 = vpop.f32.mrb[0].mxu0
      %v612 = vpop.f32.mrb[0].mxu0
      %v613 = vadd.f32 0.0, %v612
      %v614 = vpop.f32.mrb[0].mxu0
      %615 = vdwg.mxu0
      %v616 = vpack.c.bf16 %v589, %v586
      %v617 = vpack.c.bf16 %v597, %v594
      %v618 = vpack.c.bf16 %v605, %v602
      %v619 = vpack.c.bf16 %v613, %v610
      %v624 = vunpack.c.l.b16 %v616
      %v625 = vunpack.c.h.b16 %v616
      %v626 = vunpack.c.l.b16 %v617
      %v627 = vunpack.c.h.b16 %v617
      %v628 = vunpack.c.l.b16 %v618
      %v629 = vunpack.c.h.b16 %v618
      %v630 = vunpack.c.l.b16 %v619
      %v631 = vunpack.c.h.b16 %v619
      %v632 = vpack.c.b16 %v624, %v624
      %v633 = vpack.c.b16 %v625, %v625
      %v634 = vpack.c.b16 %v626, %v626
      %v635 = vpack.c.b16 %v627, %v627
      %v636 = vpack.c.b16 %v628, %v628
      %v637 = vpack.c.b16 %v629, %v629
      %v638 = vpack.c.b16 %v630, %v630
      %v639 = vpack.c.b16 %v631, %v631
      %648 = vst [vmem:[%s295] sm:$0xf] %v632
      %649 = vst [vmem:[%s295 + $0x4] sm:$0xf] %v633
      %650 = vst [vmem:[%s295 + $0x8] sm:$0xf] %v634
      %651 = vst [vmem:[%s295 + $0xc] sm:$0xf] %v635
      %652 = vst [vmem:[%s295 + $0x10] sm:$0xf] %v636
      %653 = vst [vmem:[%s295 + $0x14] sm:$0xf] %v637
      %654 = vst [vmem:[%s295 + $0x18] sm:$0xf] %v638
      %655 = vst [vmem:[%s295 + $0x1c] sm:$0xf] %v639
      %v656 = vadd.f32 %v586, %v589
      %v657 = vadd.f32 %v656, %v594
      %v658 = vadd.f32 %v657, %v597
      %v659 = vadd.f32 %v658, %v602
      %v660 = vadd.f32 %v659, %v605
      %v661 = vadd.f32 %v660, %v610
      %v662 = vadd.f32 %v661, %v613
      %v663 = vrot.slane %v662, 4
      %v664 = vadd.f32 %v662, %v663
      %v665 = vrot.slane %v664, 2
      %v666 = vadd.f32 %v664, %v665
      %v667 = vrot.slane %v666, 1
      %v668 = vadd.f32 %v666, %v667
      %v669 = vmul.f32 %v586, %v586
      %v670 = vmul.f32 %v589, %v589
      %v671 = vmul.f32 %v594, %v594
      %v672 = vmul.f32 %v597, %v597
      %v673 = vmul.f32 %v602, %v602
      %v674 = vmul.f32 %v605, %v605
      %v675 = vmul.f32 %v610, %v610
      %v676 = vmul.f32 %v613, %v613
      %v677 = vadd.f32 %v669, %v670
      %v678 = vadd.f32 %v677, %v671
      %v679 = vadd.f32 %v678, %v672
      %v680 = vadd.f32 %v679, %v673
      %v681 = vadd.f32 %v680, %v674
      %v682 = vadd.f32 %v681, %v675
      %v683 = vadd.f32 %v682, %v676
      %v684 = vrot.slane %v683, 4
      %v685 = vadd.f32 %v683, %v684
      %v686 = vrot.slane %v685, 2
      %v687 = vadd.f32 %v685, %v686
      %v688 = vrot.slane %v687, 1
      %v689 = vadd.f32 %v687, %v688
      %vm690 = vcmask 1040384
      %v691 = vsel %vm690, %v484, %v505
      %v692 = vsel %vm363, %v691, %v668
      %vm693 = vcmask 1042432
      %v694 = vsel %vm693, %v692, %v689
      %vm695 = vcmask 1043456
      %v696 = vsel %vm695, %v694, 0.0
      %697 = vst [vmem:[%s300] sm:$0xff] %v696
      %s698 = smul.u32 8, %s18
      %p699 = scmp.lt.s32.totalorder %s698, 15
      %s700 = scalar_select %p699, %s698, 15
      %s701 = smul.addr %s700, 4
      %s702 = scalar_lea.vmem %s4, %s701
      %s703 = smul.u32 8, %s18
      %p704 = scmp.lt.s32.totalorder %s703, 15
      %s705 = scalar_select %p704, %s703, 15
      %s706 = smul.addr %s705, 4
      %s707 = scalar_lea.vmem %s5, %s706
      %p708 = scmp.lt.s32.totalorder %s18, 1
      %s709 = scalar_select %p708, %s18, 1
      %s710 = smul.addr %s709, 8
      %s711 = scalar_lea.vmem %s6, %s710
      // Predicated region
      $region37: #{basic_block_forward.4} parent=35 // pred_check
        %p712 = pneg %p130
      $region38: #{basic_block_forward.4} parent=35 // pred_check_branch
        %714 = sbr.rel (%p712) target = $region40
      $region39: #{basic_block_forward.4} parent=35 // pred_region
        %s715 = smul.u32 8, %s18
      $region40: #{basic_block_forward.4} parent=35 // pred_fallthru
        _
      // Predicated region
      $region41: #{basic_block_forward.4} parent=35 // pred_check
        %p716 = pneg %p156
      $region42: #{basic_block_forward.4} parent=35 // pred_check_branch
        %718 = sbr.rel (%p716) target = $region44
      $region43: #{basic_block_forward.4} parent=35 // pred_region
        %s719 = smul.u32 8, %s18
      $region44: #{basic_block_forward.4} parent=35 // pred_fallthru
        _
      // Predicated region
      $region45: #{basic_block_forward.4} parent=35 // pred_check
        %p720 = pneg %p182
      $region46: #{basic_block_forward.4} parent=35 // pred_check_branch
        %722 = sbr.rel (%p720) target = $region48
      $region47: #{basic_block_forward.4} parent=35 // pred_region
        _
      $region48: #{basic_block_forward.4} parent=35 // pred_fallthru
        _
    $region36: #{basic_block_forward.4} parent=5 // pred_fallthru
      _
    %p723 = scmp.le.s32.totalorder 2, %s13
    // Predicated region
    $region49: #{basic_block_forward.4} parent=5 // pred_check
      %p724 = pneg %p723
    $region50: #{basic_block_forward.4} parent=5 // pred_check_branch
      %726 = sbr.rel (%p724) target = $region52
    $region51: #{basic_block_forward.4} parent=5 // pred_region
      %s727 = ssub.s32 %s13, 2
      // Predicated region
      $region53: #{basic_block_forward.4} parent=51 // pred_check
        %p728 = pneg %p136
      $region54: #{basic_block_forward.4} parent=51 // pred_check_branch
        %730 = sbr.rel (%p728) target = $region56
      $region55: #{basic_block_forward.4} parent=51 // pred_region
        %s731 = smul.u32 8, %s19
        %p732 = scmp.lt.s32.totalorder %s731, 15
        %s733 = scalar_select %p732, %s731, 15
        %s734 = smul.addr %s733, 4
        %s735 = scalar_lea.vmem %s4, %s734
      $region56: #{basic_block_forward.4} parent=51 // pred_fallthru
        _
      // Predicated region
      $region57: #{basic_block_forward.4} parent=51 // pred_check
        %p736 = pneg %p162
      $region58: #{basic_block_forward.4} parent=51 // pred_check_branch
        %738 = sbr.rel (%p736) target = $region60
      $region59: #{basic_block_forward.4} parent=51 // pred_region
        %s739 = smul.u32 8, %s19
        %p740 = scmp.lt.s32.totalorder %s739, 15
        %s741 = scalar_select %p740, %s739, 15
        %s742 = smul.addr %s741, 4
        %s743 = scalar_lea.vmem %s5, %s742
      $region60: #{basic_block_forward.4} parent=51 // pred_fallthru
        _
      // Predicated region
      $region61: #{basic_block_forward.4} parent=51 // pred_check
        %p744 = pneg %p188
      $region62: #{basic_block_forward.4} parent=51 // pred_check_branch
        %746 = sbr.rel (%p744) target = $region64
      $region63: #{basic_block_forward.4} parent=51 // pred_region
        %p747 = scmp.lt.s32.totalorder %s19, 1
        %s748 = scalar_select %p747, %s19, 1
        %s749 = smul.addr %s748, 8
        %s750 = scalar_lea.vmem %s6, %s749
      $region64: #{basic_block_forward.4} parent=51 // pred_fallthru
        _
    $region52: #{basic_block_forward.4} parent=5 // pred_fallthru
      _
  $region6: #{basic_block_forward.4} parent=0 // loop_footer
    %s17 = sadd.s32 1, %s13
  $region7: #{basic_block_forward.4} parent=0 // loop_footer_branch
    %12 = sbr.rel target = $region3
  $region8: #{basic_block_forward.4} parent=0 // loop_exit
    _

// kernel: basic_block_forward.6
$region0: #{basic_block_forward.6}
  #allocation0 [shape = 'u32[]', space=smem, size = 0x4, offset = 0x4, fixed_abs, tag = 'smem constant byte address 0x4 - core index']
  #allocation1 [shape = 'u32[144,128]{1,0:T(1,128)}', space=vmem, size = 0x12000, scoped, tag = 'internal scratch']
  %s0 = inlined_call_operand.vmem [shape: bf16[128,72], index: 0, kind: input, shape index: {}]
  %s1 = inlined_call_operand.vmem [shape: bf16[72,128], index: 1, kind: input, shape index: {}]
  %s2 = inlined_call_operand.vmem [shape: bf16[128,128], index: 2, kind: output, shape index: {0}]
  %s3 = inlined_call_operand.vmem [shape: f32[16,128], index: 3, kind: output, shape index: {1}]
  %4 = xla_tuple %s2, %s3
  %s5 = sld [smem:[#allocation0]]
  $region49: #{basic_block_forward.6} parent=0
    _
  %s7 = ssub.s32 1, %s5
  %s8 = scalar_select 0, %s7, %s5
  loop: start=0, step=1, limit=4
  $region2: #{basic_block_forward.6} parent=0 // loop_pre_header
    _
  $region3: #{basic_block_forward.6} parent=0 // loop_header
    %s10 = sphi 0, %s14
    %p11 = scmp.ge.s32.totalorder %s10, 4
    %s20 = sphi 0, %s22
    %s23 = sphi 0, %s20
    %s24 = sphi 0, %s23
    %s40 = sphi 0, %s24
    %s44 = sphi 0, %s44
    %s46 = sphi 0, %s44
    %s47 = sphi 0, %s46
    %s61 = sphi 0, %s47
    %s67 = sphi 0, %s69
    %s70 = sphi 0, %s67
    %s71 = sphi 0, %s70
    %s87 = sphi 0, %s71
    %s93 = sphi 0, %s95
    %s96 = sphi 0, %s93
    %s97 = sphi 0, %s96
    %s113 = sphi 0, %s97
  $region4: #{basic_block_forward.6} parent=0 // loop_header_branch
    %13 = sbr.rel (%p11) target = $region8
  $region5: #{basic_block_forward.6} parent=0 // loop_body
    %s15 = ssub.s32 %s10, 1
    %s16 = ssub.s32 %s10, 2
    %s17 = sadd.s32 %s10, 1
    %s18 = ssub.s32 %s10, %s17
    %p19 = scmp.eq.s32.totalorder %s18, 0
    %s21 = sadd.s32 %s20, 1
    %s22 = scalar_select %p19, %s20, %s21
    %p25 = pneg %p19
    %p26 = scmp.eq.s32.totalorder %s10, 1
    %p27 = por %p25, %p26
    %p28 = scmp.ne.s32.totalorder %s20, %s23
    %p29 = scmp.eq.s32.totalorder %s10, 0
    %p30 = por %p28, %p29
    %p31 = scmp.ne.s32.totalorder %s20, %s23
    %p32 = scmp.eq.s32.totalorder %s15, 1
    %p33 = por %p31, %p32
    %p34 = scmp.ne.s32.totalorder %s23, %s24
    %p35 = scmp.eq.s32.totalorder %s15, 0
    %p36 = por %p34, %p35
    %p37 = scmp.ne.s32.totalorder %s23, %s24
    %p38 = scmp.eq.s32.totalorder %s16, 1
    %p39 = por %p37, %p38
    %p41 = scmp.ne.s32.totalorder %s24, %s40
    %p42 = scmp.eq.s32.totalorder %s16, 0
    %p43 = por %p41, %p42
    %s45 = sadd.s32 %s44, 1
    %p48 = scmp.eq.s32.totalorder %s10, 1
    %p49 = scmp.ne.s32.totalorder %s44, %s46
    %p50 = scmp.eq.s32.totalorder %s10, 0
    %p51 = por %p49, %p50
    %p52 = scmp.ne.s32.totalorder %s44, %s46
    %p53 = scmp.eq.s32.totalorder %s15, 1
    %p54 = por %p52, %p53
    %p55 = scmp.ne.s32.totalorder %s46, %s47
    %p56 = scmp.eq.s32.totalorder %s15, 0
    %p57 = por %p55, %p56
    %p58 = scmp.ne.s32.totalorder %s46, %s47
    %p59 = scmp.eq.s32.totalorder %s16, 1
    %p60 = por %p58, %p59
    %p62 = scmp.ne.s32.totalorder %s47, %s61
    %p63 = scmp.eq.s32.totalorder %s16, 0
    %p64 = por %p62, %p63
    %s65 = ssub.s32 %s10, %s17
    %p66 = scmp.eq.s32.totalorder %s65, 0
    %s68 = sadd.s32 %s67, 1
    %s69 = scalar_select %p66, %s67, %s68
    %p72 = pneg %p66
    %p73 = scmp.eq.s32.totalorder %s10, 1
    %p74 = por %p72, %p73
    %p75 = scmp.ne.s32.totalorder %s67, %s70
    %p76 = scmp.eq.s32.totalorder %s10, 0
    %p77 = por %p75, %p76
    %p78 = scmp.ne.s32.totalorder %s67, %s70
    %p79 = scmp.eq.s32.totalorder %s15, 1
    %p80 = por %p78, %p79
    %p81 = scmp.ne.s32.totalorder %s70, %s71
    %p82 = scmp.eq.s32.totalorder %s15, 0
    %p83 = por %p81, %p82
    %p84 = scmp.ne.s32.totalorder %s70, %s71
    %p85 = scmp.eq.s32.totalorder %s16, 1
    %p86 = por %p84, %p85
    %p88 = scmp.ne.s32.totalorder %s71, %s87
    %p89 = scmp.eq.s32.totalorder %s16, 0
    %p90 = por %p88, %p89
    %s91 = ssub.s32 %s10, %s17
    %p92 = scmp.eq.s32.totalorder %s91, 0
    %s94 = sadd.s32 %s93, 1
    %s95 = scalar_select %p92, %s93, %s94
    %p98 = pneg %p92
    %p99 = scmp.eq.s32.totalorder %s10, 1
    %p100 = por %p98, %p99
    %p101 = scmp.ne.s32.totalorder %s93, %s96
    %p102 = scmp.eq.s32.totalorder %s10, 0
    %p103 = por %p101, %p102
    %p104 = scmp.ne.s32.totalorder %s93, %s96
    %p105 = scmp.eq.s32.totalorder %s15, 1
    %p106 = por %p104, %p105
    %p107 = scmp.ne.s32.totalorder %s96, %s97
    %p108 = scmp.eq.s32.totalorder %s15, 0
    %p109 = por %p107, %p108
    %p110 = scmp.ne.s32.totalorder %s96, %s97
    %p111 = scmp.eq.s32.totalorder %s16, 1
    %p112 = por %p110, %p111
    %p114 = scmp.ne.s32.totalorder %s97, %s113
    %p115 = scmp.eq.s32.totalorder %s16, 0
    %p116 = por %p114, %p115
    %p117 = scmp.le.s32.totalorder 1, %s10
    %p118 = scmp.lt.s32.totalorder %s10, 3
    %p119 = pnand %p117, %p118
    %p120 = pneg %p119
    // Predicated region
    $region9: #{basic_block_forward.6} parent=5 // pred_check
      _
    $region10: #{basic_block_forward.6} parent=5 // pred_check_branch
      %122 = sbr.rel (%p119) target = $region12
    $region11: #{basic_block_forward.6} parent=5 // pred_region
      %s123 = ssub.s32 %s10, 1
      // Predicated region
      $region13: #{basic_block_forward.6} parent=11 // pred_check
        %p124 = pneg %p57
      $region14: #{basic_block_forward.6} parent=11 // pred_check_branch
        %126 = sbr.rel (%p124) target = $region16
      $region15: #{basic_block_forward.6} parent=11 // pred_region
        _
      $region16: #{basic_block_forward.6} parent=11 // pred_fallthru
        _
    $region12: #{basic_block_forward.6} parent=5 // pred_fallthru
      _
    %p127 = scmp.lt.s32.totalorder %s10, 2
    // Predicated region
    $region17: #{basic_block_forward.6} parent=5 // pred_check
      %p128 = pneg %p127
    $region18: #{basic_block_forward.6} parent=5 // pred_check_branch
      %130 = sbr.rel (%p128) target = $region20
    $region19: #{basic_block_forward.6} parent=5 // pred_region
      // Predicated region
      $region21: #{basic_block_forward.6} parent=19 // pred_check
        %p131 = pneg %p30
      $region22: #{basic_block_forward.6} parent=19 // pred_check_branch
        %133 = sbr.rel (%p131) target = $region24
      $region23: #{basic_block_forward.6} parent=19 // pred_region
        %s134 = smul.u32 8, %s10
        %p135 = scmp.lt.s32.totalorder %s134, 15
        %s136 = scalar_select %p135, %s134, 15
        %s137 = smul.addr %s136, 4
        %s138 = scalar_lea.vmem %s0, %s137
        %s139 = smul.u32 8, %s10
      $region24: #{basic_block_forward.6} parent=19 // pred_fallthru
        _
    $region20: #{basic_block_forward.6} parent=5 // pred_fallthru
      _
    %p140 = scmp.le.s32.totalorder 1, %s10
    %p141 = scmp.lt.s32.totalorder %s10, 3
    %p142 = pnand %p140, %p141
    %p143 = pneg %p142
    // Predicated region
    $region25: #{basic_block_forward.6} parent=5 // pred_check
      _
    $region26: #{basic_block_forward.6} parent=5 // pred_check_branch
      %145 = sbr.rel (%p142) target = $region28
    $region27: #{basic_block_forward.6} parent=5 // pred_region
      %s146 = ssub.s32 %s10, 1
      %s147 = smul.u32 8, %s15
      %p148 = scmp.lt.s32.totalorder %s147, 15
      %s149 = scalar_select %p148, %s147, 15
      %s150 = smul.addr %s149, 4
      %s151 = scalar_lea.vmem %s0, %s150
      %p152 = pneg %p36
      %p153 = pneg %p33
      %p154 = pneg %p57
      %p155 = pneg %p54
      %p156 = pneg %p83
      %p157 = pneg %p80
      %s158 = smul.u32 8, %s15
      %p159 = scmp.lt.s32.totalorder %s158, 15
      %s160 = scalar_select %p159, %s158, 15
      %s161 = smul.addr %s160, 4
      %s162 = scalar_lea.vmem %s2, %s161
      %p163 = pneg %p109
      %p164 = pneg %p106
      %p165 = scmp.lt.s32.totalorder %s15, 1
      %s166 = scalar_select %p165, %s15, 1
      %s167 = smul.addr %s166, 8
      %s168 = scalar_lea.vmem %s3, %s167
      %s169 = smul.u32 8, %s15
      %p170 = scmp.lt.s32.totalorder %s169, 15
      %s171 = scalar_select %p170, %s169, 15
      %s172 = smul.addr %s171, 4
      %s173 = scalar_lea.vmem %s0, %s172
      %s174 = smul.u32 8, %s15
      %s175 = smul.u32 8, %s15
      %p176 = scmp.lt.s32.totalorder %s175, 15
      %s177 = scalar_select %p176, %s175, 15
      %s178 = smul.addr %s177, 4
      %s179 = scalar_lea.vmem %s2, %s178
      %s180 = smul.u32 8, %s15
      %p181 = scmp.lt.s32.totalorder %s15, 1
      %s182 = scalar_select %p181, %s15, 1
      %s183 = smul.addr %s182, 8
      %s184 = scalar_lea.vmem %s3, %s183
      %v186 = vld [vmem:[%s173] sm:$0xf]
      %v187 = vld [vmem:[%s173 + $0x4] sm:$0xf]
      %v188 = vld [vmem:[%s173 + $0x8] sm:$0xf]
      %v189 = vld [vmem:[%s173 + $0xc] sm:$0xf]
      %v190 = vld [vmem:[%s173 + $0x10] sm:$0xf]
      %v191 = vld [vmem:[%s173 + $0x14] sm:$0xf]
      %v192 = vld [vmem:[%s173 + $0x18] sm:$0xf]
      %v193 = vld [vmem:[%s173 + $0x1c] sm:$0xf]
      %v194 = vld [vmem:[%s1] sm:$0xf]
      %v195 = vld [vmem:[%s1 + $0x4] sm:$0xf]
      %v196 = vld [vmem:[%s1 + $0x8] sm:$0xf]
      %v197 = vld [vmem:[%s1 + $0xc] sm:$0xf]
      %v198 = vld [vmem:[%s1 + $0x10] sm:$0xf]
      %v199 = vld [vmem:[%s1 + $0x14] sm:$0xf]
      %v200 = vld [vmem:[%s1 + $0x18] sm:$0xf]
      %v201 = vld [vmem:[%s1 + $0x1c] sm:$0xf]
      %v202 = vld [vmem:[%s1 + $0x20] sm:$0xf]
      %v211 = vunpack.c.l.b16 %v186
      %v212 = vunpack.c.l.b16 %v187
      %v213 = vunpack.c.l.b16 %v188
      %v214 = vunpack.c.l.b16 %v189
      %v215 = vunpack.c.l.b16 %v190
      %v216 = vunpack.c.l.b16 %v191
      %v217 = vunpack.c.l.b16 %v192
      %v218 = vunpack.c.l.b16 %v193
      %v219 = vpack.c.b16 %v212, %v211
      %v220 = vpack.c.b16 %v214, %v213
      %v221 = vpack.c.b16 %v216, %v215
      %v222 = vpack.c.b16 %v218, %v217
      %v232 = vunpack.c.l.b16 %v194
      %v233 = vunpack.c.l.b16 %v195
      %v234 = vunpack.c.l.b16 %v196
      %v235 = vunpack.c.l.b16 %v197
      %v236 = vunpack.c.l.b16 %v198
      %v237 = vunpack.c.l.b16 %v199
      %v238 = vunpack.c.l.b16 %v200
      %v239 = vunpack.c.l.b16 %v201
      %v240 = vunpack.c.l.b16 %v202
      %v241 = vpack.c.b16 %v233, %v232
      %v242 = vpack.c.b16 %v235, %v234
      %v243 = vpack.c.b16 %v237, %v236
      %v244 = vpack.c.b16 %v239, %v238
      %v245 = vpack.c.b16 %v240, %v240
      %vm250 = vcmask 588800
      %v252 = vsel %vm250, %v219, 0
      %v255 = vsel %vm250, %v220, 0
      %v258 = vsel %vm250, %v221, 0
      %v261 = vsel %vm250, %v222, 0
      %vm263 = vcmask 1043456
      %v265 = vsel %vm263, %v245, 0
      %267 = vmatprep.subr.bf16.mxu0 0
      %268 = vmatpush1.bf16.msra.mxu0 %v241
      %269 = vmatprep.subr.bf16.mxu0 0
      %270 = vmatpush1.bf16.msra.mxu0 %v242
      %271 = vmatprep.subr.bf16.mxu0 0
      %272 = vmatpush1.bf16.msra.mxu0 %v243
      %273 = vmatprep.subr.bf16.mxu0 0
      %274 = vmatpush1.bf16.msra.mxu0 %v244
      %275 = vmatprep.subr.bf16.mxu0 0
      %276 = vmatpush1.bf16.msra.mxu0 %v265
      %277 = vmatprep.subr.bf16.mxu0 0
      %278 = vmatpush1.bf16.msra.mxu0 0
      %279 = vmatprep.subr.bf16.mxu0 0
      %280 = vmatpush1.bf16.msra.mxu0 0
      %281 = vmatprep.subr.bf16.mxu0 0
      %282 = vmatpush1.bf16.msra.mxu0 0
      %283 = vmatprep.subr.bf16.mxu0 0
      %284 = vmatpush1.bf16.msra.mxu0 0
      %285 = vmatprep.subr.bf16.mxu0 0
      %286 = vmatpush1.bf16.msra.mxu0 0
      %287 = vmatprep.subr.bf16.mxu0 0
      %288 = vmatpush1.bf16.msra.mxu0 0
      %289 = vmatprep.subr.bf16.mxu0 0
      %290 = vmatpush1.bf16.msra.mxu0 0
      %291 = vmatprep.subr.bf16.mxu0 0
      %292 = vmatpush1.bf16.msra.mxu0 0
      %293 = vmatprep.subr.bf16.mxu0 0
      %294 = vmatpush1.bf16.msra.mxu0 0
      %295 = vmatprep.subr.bf16.mxu0 0
      %296 = vmatpush1.bf16.msra.mxu0 0
      %297 = vmatprep.subr.bf16.mxu0 0
      %298 = vmatpush1.bf16.msra.mxu0 0
      %299 = vmatprep.mubr.bf16.mxu0 0
      %300 = vmatmul.mubr.bf16.gmra.mrb[0].mxu0 %v252
      %v301 = vpop.f32.mrb[0].mxu0
      %v302 = vadd.f32 0.0, %v301
      %v303 = vpop.f32.mrb[0].mxu0
      %v304 = vpop.f32.mrb[0].mxu0
      %v305 = vadd.f32 0.0, %v304
      %v306 = vpop.f32.mrb[0].mxu0
      %307 = vmatprep.mubr.bf16.mxu0 0
      %308 = vmatmul.mubr.bf16.gmra.mrb[0].mxu0 %v255
      %v309 = vpop.f32.mrb[0].mxu0
      %v310 = vadd.f32 0.0, %v309
      %v311 = vpop.f32.mrb[0].mxu0
      %v312 = vpop.f32.mrb[0].mxu0
      %v313 = vadd.f32 0.0, %v312
      %v314 = vpop.f32.mrb[0].mxu0
      %315 = vmatprep.mubr.bf16.mxu0 0
      %316 = vmatmul.mubr.bf16.gmra.mrb[0].mxu0 %v258
      %v317 = vpop.f32.mrb[0].mxu0
      %v318 = vadd.f32 0.0, %v317
      %v319 = vpop.f32.mrb[0].mxu0
      %v320 = vpop.f32.mrb[0].mxu0
      %v321 = vadd.f32 0.0, %v320
      %v322 = vpop.f32.mrb[0].mxu0
      %323 = vmatprep.mubr.bf16.mxu0 0
      %324 = vmatmul.mubr.bf16.gmra.mrb[0].mxu0 %v261
      %v325 = vpop.f32.mrb[0].mxu0
      %v326 = vadd.f32 0.0, %v325
      %v327 = vpop.f32.mrb[0].mxu0
      %v328 = vpop.f32.mrb[0].mxu0
      %v329 = vadd.f32 0.0, %v328
      %v330 = vpop.f32.mrb[0].mxu0
      %331 = vdwg.mxu0
      %v332 = vpack.c.bf16 %v305, %v302
      %v333 = vpack.c.bf16 %v313, %v310
      %v334 = vpack.c.bf16 %v321, %v318
      %v335 = vpack.c.bf16 %v329, %v326
      %v340 = vunpack.c.l.b16 %v332
      %v341 = vunpack.c.h.b16 %v332
      %v342 = vunpack.c.l.b16 %v333
      %v343 = vunpack.c.h.b16 %v333
      %v344 = vunpack.c.l.b16 %v334
      %v345 = vunpack.c.h.b16 %v334
      %v346 = vunpack.c.l.b16 %v335
      %v347 = vunpack.c.h.b16 %v335
      %v348 = vpack.c.b16 %v340, %v340
      %v349 = vpack.c.b16 %v341, %v341
      %v350 = vpack.c.b16 %v342, %v342
      %v351 = vpack.c.b16 %v343, %v343
      %v352 = vpack.c.b16 %v344, %v344
      %v353 = vpack.c.b16 %v345, %v345
      %v354 = vpack.c.b16 %v346, %v346
      %v355 = vpack.c.b16 %v347, %v347
      %364 = vst [vmem:[%s179] sm:$0xf] %v348
      %365 = vst [vmem:[%s179 + $0x4] sm:$0xf] %v349
      %366 = vst [vmem:[%s179 + $0x8] sm:$0xf] %v350
      %367 = vst [vmem:[%s179 + $0xc] sm:$0xf] %v351
      %368 = vst [vmem:[%s179 + $0x10] sm:$0xf] %v352
      %369 = vst [vmem:[%s179 + $0x14] sm:$0xf] %v353
      %370 = vst [vmem:[%s179 + $0x18] sm:$0xf] %v354
      %371 = vst [vmem:[%s179 + $0x1c] sm:$0xf] %v355
      %v372 = vadd.f32 %v302, %v305
      %v373 = vadd.f32 %v372, %v310
      %v374 = vadd.f32 %v373, %v313
      %v375 = vadd.f32 %v374, %v318
      %v376 = vadd.f32 %v375, %v321
      %v377 = vadd.f32 %v376, %v326
      %v378 = vadd.f32 %v377, %v329
      %v379 = vrot.slane %v378, 4
      %v380 = vadd.f32 %v378, %v379
      %v381 = vrot.slane %v380, 2
      %v382 = vadd.f32 %v380, %v381
      %v383 = vrot.slane %v382, 1
      %v384 = vadd.f32 %v382, %v383
      %v385 = vmul.f32 %v302, %v302
      %v386 = vmul.f32 %v305, %v305
      %v387 = vmul.f32 %v310, %v310
      %v388 = vmul.f32 %v313, %v313
      %v389 = vmul.f32 %v318, %v318
      %v390 = vmul.f32 %v321, %v321
      %v391 = vmul.f32 %v326, %v326
      %v392 = vmul.f32 %v329, %v329
      %v393 = vadd.f32 %v385, %v386
      %v394 = vadd.f32 %v393, %v387
      %v395 = vadd.f32 %v394, %v388
      %v396 = vadd.f32 %v395, %v389
      %v397 = vadd.f32 %v396, %v390
      %v398 = vadd.f32 %v397, %v391
      %v399 = vadd.f32 %v398, %v392
      %v400 = vrot.slane %v399, 4
      %v401 = vadd.f32 %v399, %v400
      %v402 = vrot.slane %v401, 2
      %v403 = vadd.f32 %v401, %v402
      %v404 = vrot.slane %v403, 1
      %v405 = vadd.f32 %v403, %v404
      %vm406 = vcmask 1040384
      %v407 = vsel %vm406, %v384, %v405
      %vm408 = vcmask 1041408
      %v409 = vsel %vm408, %v407, 0.0
      %410 = vst [vmem:[%s184] sm:$0xff] %v409
      %s411 = smul.u32 8, %s15
      %p412 = scmp.lt.s32.totalorder %s411, 15
      %s413 = scalar_select %p412, %s411, 15
      %s414 = smul.addr %s413, 4
      %s415 = scalar_lea.vmem %s2, %s414
      %p416 = scmp.lt.s32.totalorder %s15, 1
      %s417 = scalar_select %p416, %s15, 1
      %s418 = smul.addr %s417, 8
      %s419 = scalar_lea.vmem %s3, %s418
      // Predicated region
      $region29: #{basic_block_forward.6} parent=27 // pred_check
        %p420 = pneg %p80
      $region30: #{basic_block_forward.6} parent=27 // pred_check_branch
        %422 = sbr.rel (%p420) target = $region32
      $region31: #{basic_block_forward.6} parent=27 // pred_region
        %s423 = smul.u32 8, %s15
      $region32: #{basic_block_forward.6} parent=27 // pred_fallthru
        _
      // Predicated region
      $region33: #{basic_block_forward.6} parent=27 // pred_check
        %p424 = pneg %p106
      $region34: #{basic_block_forward.6} parent=27 // pred_check_branch
        %426 = sbr.rel (%p424) target = $region36
      $region35: #{basic_block_forward.6} parent=27 // pred_region
        _
      $region36: #{basic_block_forward.6} parent=27 // pred_fallthru
        _
    $region28: #{basic_block_forward.6} parent=5 // pred_fallthru
      _
    %p427 = scmp.le.s32.totalorder 2, %s10
    // Predicated region
    $region37: #{basic_block_forward.6} parent=5 // pred_check
      %p428 = pneg %p427
    $region38: #{basic_block_forward.6} parent=5 // pred_check_branch
      %430 = sbr.rel (%p428) target = $region40
    $region39: #{basic_block_forward.6} parent=5 // pred_region
      %s431 = ssub.s32 %s10, 2
      // Predicated region
      $region41: #{basic_block_forward.6} parent=39 // pred_check
        %p432 = pneg %p86
      $region42: #{basic_block_forward.6} parent=39 // pred_check_branch
        %434 = sbr.rel (%p432) target = $region44
      $region43: #{basic_block_forward.6} parent=39 // pred_region
        %s435 = smul.u32 8, %s16
        %p436 = scmp.lt.s32.totalorder %s435, 15
        %s437 = scalar_select %p436, %s435, 15
        %s438 = smul.addr %s437, 4
        %s439 = scalar_lea.vmem %s2, %s438
      $region44: #{basic_block_forward.6} parent=39 // pred_fallthru
        _
      // Predicated region
      $region45: #{basic_block_forward.6} parent=39 // pred_check
        %p440 = pneg %p112
      $region46: #{basic_block_forward.6} parent=39 // pred_check_branch
        %442 = sbr.rel (%p440) target = $region48
      $region47: #{basic_block_forward.6} parent=39 // pred_region
        %p443 = scmp.lt.s32.totalorder %s16, 1
        %s444 = scalar_select %p443, %s16, 1
        %s445 = smul.addr %s444, 8
        %s446 = scalar_lea.vmem %s3, %s445
      $region48: #{basic_block_forward.6} parent=39 // pred_fallthru
        _
    $region40: #{basic_block_forward.6} parent=5 // pred_fallthru
      _
  $region6: #{basic_block_forward.6} parent=0 // loop_footer
    %s14 = sadd.s32 1, %s10
  $region7: #{basic_block_forward.6} parent=0 // loop_footer_branch
    %9 = sbr.rel target = $region3
  $region8: #{basic_block_forward.6} parent=0 // loop_exit
    _

// kernel: basic_block_forward.7
$region0: #{basic_block_forward.7}
  #allocation0 [shape = 'u32[]', space=smem, size = 0x4, offset = 0x4, fixed_abs, tag = 'smem constant byte address 0x4 - core index']
  #allocation1 [shape = 'u32[144,128]{1,0:T(1,128)}', space=vmem, size = 0x12000, scoped, tag = 'internal scratch']
  %s0 = inlined_call_operand.vmem [shape: bf16[128,128], index: 0, kind: input, shape index: {}]
  %s1 = inlined_call_operand.vmem [shape: f32[8,128], index: 1, kind: input, shape index: {}]
  %s2 = inlined_call_operand.vmem [shape: bf16[128,128], index: 2, kind: input, shape index: {}]
  %s3 = inlined_call_operand.vmem [shape: bf16[128,128], index: 3, kind: output, shape index: {}]
  %s4 = sld [smem:[#allocation0]]
  $region45: #{basic_block_forward.7} parent=0
    _
  %s6 = ssub.s32 1, %s4
  %s7 = scalar_select 0, %s6, %s4
  loop: start=0, step=1, limit=4
  $region2: #{basic_block_forward.7} parent=0 // loop_pre_header
    _
  $region3: #{basic_block_forward.7} parent=0 // loop_header
    %s9 = sphi 0, %s13
    %p10 = scmp.ge.s32.totalorder %s9, 4
    %s19 = sphi 0, %s21
    %s22 = sphi 0, %s19
    %s23 = sphi 0, %s22
    %s39 = sphi 0, %s23
    %s43 = sphi 0, %s43
    %s45 = sphi 0, %s43
    %s46 = sphi 0, %s45
    %s60 = sphi 0, %s46
    %s66 = sphi 0, %s68
    %s69 = sphi 0, %s66
    %s70 = sphi 0, %s69
    %s86 = sphi 0, %s70
    %s92 = sphi 0, %s94
    %s95 = sphi 0, %s92
    %s96 = sphi 0, %s95
    %s112 = sphi 0, %s96
  $region4: #{basic_block_forward.7} parent=0 // loop_header_branch
    %12 = sbr.rel (%p10) target = $region8
  $region5: #{basic_block_forward.7} parent=0 // loop_body
    %s14 = ssub.s32 %s9, 1
    %s15 = ssub.s32 %s9, 2
    %s16 = sadd.s32 %s9, 1
    %s17 = ssub.s32 %s9, %s16
    %p18 = scmp.eq.s32.totalorder %s17, 0
    %s20 = sadd.s32 %s19, 1
    %s21 = scalar_select %p18, %s19, %s20
    %p24 = pneg %p18
    %p25 = scmp.eq.s32.totalorder %s9, 1
    %p26 = por %p24, %p25
    %p27 = scmp.ne.s32.totalorder %s19, %s22
    %p28 = scmp.eq.s32.totalorder %s9, 0
    %p29 = por %p27, %p28
    %p30 = scmp.ne.s32.totalorder %s19, %s22
    %p31 = scmp.eq.s32.totalorder %s14, 1
    %p32 = por %p30, %p31
    %p33 = scmp.ne.s32.totalorder %s22, %s23
    %p34 = scmp.eq.s32.totalorder %s14, 0
    %p35 = por %p33, %p34
    %p36 = scmp.ne.s32.totalorder %s22, %s23
    %p37 = scmp.eq.s32.totalorder %s15, 1
    %p38 = por %p36, %p37
    %p40 = scmp.ne.s32.totalorder %s23, %s39
    %p41 = scmp.eq.s32.totalorder %s15, 0
    %p42 = por %p40, %p41
    %s44 = sadd.s32 %s43, 1
    %p47 = scmp.eq.s32.totalorder %s9, 1
    %p48 = scmp.ne.s32.totalorder %s43, %s45
    %p49 = scmp.eq.s32.totalorder %s9, 0
    %p50 = por %p48, %p49
    %p51 = scmp.ne.s32.totalorder %s43, %s45
    %p52 = scmp.eq.s32.totalorder %s14, 1
    %p53 = por %p51, %p52
    %p54 = scmp.ne.s32.totalorder %s45, %s46
    %p55 = scmp.eq.s32.totalorder %s14, 0
    %p56 = por %p54, %p55
    %p57 = scmp.ne.s32.totalorder %s45, %s46
    %p58 = scmp.eq.s32.totalorder %s15, 1
    %p59 = por %p57, %p58
    %p61 = scmp.ne.s32.totalorder %s46, %s60
    %p62 = scmp.eq.s32.totalorder %s15, 0
    %p63 = por %p61, %p62
    %s64 = ssub.s32 %s9, %s16
    %p65 = scmp.eq.s32.totalorder %s64, 0
    %s67 = sadd.s32 %s66, 1
    %s68 = scalar_select %p65, %s66, %s67
    %p71 = pneg %p65
    %p72 = scmp.eq.s32.totalorder %s9, 1
    %p73 = por %p71, %p72
    %p74 = scmp.ne.s32.totalorder %s66, %s69
    %p75 = scmp.eq.s32.totalorder %s9, 0
    %p76 = por %p74, %p75
    %p77 = scmp.ne.s32.totalorder %s66, %s69
    %p78 = scmp.eq.s32.totalorder %s14, 1
    %p79 = por %p77, %p78
    %p80 = scmp.ne.s32.totalorder %s69, %s70
    %p81 = scmp.eq.s32.totalorder %s14, 0
    %p82 = por %p80, %p81
    %p83 = scmp.ne.s32.totalorder %s69, %s70
    %p84 = scmp.eq.s32.totalorder %s15, 1
    %p85 = por %p83, %p84
    %p87 = scmp.ne.s32.totalorder %s70, %s86
    %p88 = scmp.eq.s32.totalorder %s15, 0
    %p89 = por %p87, %p88
    %s90 = ssub.s32 %s9, %s16
    %p91 = scmp.eq.s32.totalorder %s90, 0
    %s93 = sadd.s32 %s92, 1
    %s94 = scalar_select %p91, %s92, %s93
    %p97 = pneg %p91
    %p98 = scmp.eq.s32.totalorder %s9, 1
    %p99 = por %p97, %p98
    %p100 = scmp.ne.s32.totalorder %s92, %s95
    %p101 = scmp.eq.s32.totalorder %s9, 0
    %p102 = por %p100, %p101
    %p103 = scmp.ne.s32.totalorder %s92, %s95
    %p104 = scmp.eq.s32.totalorder %s14, 1
    %p105 = por %p103, %p104
    %p106 = scmp.ne.s32.totalorder %s95, %s96
    %p107 = scmp.eq.s32.totalorder %s14, 0
    %p108 = por %p106, %p107
    %p109 = scmp.ne.s32.totalorder %s95, %s96
    %p110 = scmp.eq.s32.totalorder %s15, 1
    %p111 = por %p109, %p110
    %p113 = scmp.ne.s32.totalorder %s96, %s112
    %p114 = scmp.eq.s32.totalorder %s15, 0
    %p115 = por %p113, %p114
    %p116 = scmp.le.s32.totalorder 1, %s9
    %p117 = scmp.lt.s32.totalorder %s9, 3
    %p118 = pnand %p116, %p117
    %p119 = pneg %p118
    // Predicated region
    $region9: #{basic_block_forward.7} parent=5 // pred_check
      _
    $region10: #{basic_block_forward.7} parent=5 // pred_check_branch
      %121 = sbr.rel (%p118) target = $region12
    $region11: #{basic_block_forward.7} parent=5 // pred_region
      %s122 = ssub.s32 %s9, 1
      // Predicated region
      $region13: #{basic_block_forward.7} parent=11 // pred_check
        %p123 = pneg %p56
      $region14: #{basic_block_forward.7} parent=11 // pred_check_branch
        %125 = sbr.rel (%p123) target = $region16
      $region15: #{basic_block_forward.7} parent=11 // pred_region
        _
      $region16: #{basic_block_forward.7} parent=11 // pred_fallthru
        _
    $region12: #{basic_block_forward.7} parent=5 // pred_fallthru
      _
    %p126 = scmp.lt.s32.totalorder %s9, 2
    // Predicated region
    $region17: #{basic_block_forward.7} parent=5 // pred_check
      %p127 = pneg %p126
    $region18: #{basic_block_forward.7} parent=5 // pred_check_branch
      %129 = sbr.rel (%p127) target = $region20
    $region19: #{basic_block_forward.7} parent=5 // pred_region
      // Predicated region
      $region21: #{basic_block_forward.7} parent=19 // pred_check
        %p130 = pneg %p29
      $region22: #{basic_block_forward.7} parent=19 // pred_check_branch
        %132 = sbr.rel (%p130) target = $region24
      $region23: #{basic_block_forward.7} parent=19 // pred_region
        %s133 = smul.u32 8, %s9
        %p134 = scmp.lt.s32.totalorder %s133, 15
        %s135 = scalar_select %p134, %s133, 15
        %s136 = smul.addr %s135, 4
        %s137 = scalar_lea.vmem %s0, %s136
        %s138 = smul.u32 8, %s9
      $region24: #{basic_block_forward.7} parent=19 // pred_fallthru
        _
      // Predicated region
      $region25: #{basic_block_forward.7} parent=19 // pred_check
        %p139 = pneg %p76
      $region26: #{basic_block_forward.7} parent=19 // pred_check_branch
        %141 = sbr.rel (%p139) target = $region28
      $region27: #{basic_block_forward.7} parent=19 // pred_region
        %s142 = smul.u32 8, %s9
        %p143 = scmp.lt.s32.totalorder %s142, 15
        %s144 = scalar_select %p143, %s142, 15
        %s145 = smul.addr %s144, 4
        %s146 = scalar_lea.vmem %s2, %s145
        %s147 = smul.u32 8, %s9
      $region28: #{basic_block_forward.7} parent=19 // pred_fallthru
        _
    $region20: #{basic_block_forward.7} parent=5 // pred_fallthru
      _
    %p148 = scmp.le.s32.totalorder 1, %s9
    %p149 = scmp.lt.s32.totalorder %s9, 3
    %p150 = pnand %p148, %p149
    %p151 = pneg %p150
    // Predicated region
    $region29: #{basic_block_forward.7} parent=5 // pred_check
      _
    $region30: #{basic_block_forward.7} parent=5 // pred_check_branch
      %153 = sbr.rel (%p150) target = $region32
    $region31: #{basic_block_forward.7} parent=5 // pred_region
      %s154 = ssub.s32 %s9, 1
      %s155 = smul.u32 8, %s14
      %p156 = scmp.lt.s32.totalorder %s155, 15
      %s157 = scalar_select %p156, %s155, 15
      %s158 = smul.addr %s157, 4
      %s159 = scalar_lea.vmem %s0, %s158
      %p160 = pneg %p35
      %p161 = pneg %p32
      %p162 = pneg %p56
      %p163 = pneg %p53
      %s164 = smul.u32 8, %s14
      %p165 = scmp.lt.s32.totalorder %s164, 15
      %s166 = scalar_select %p165, %s164, 15
      %s167 = smul.addr %s166, 4
      %s168 = scalar_lea.vmem %s2, %s167
      %p169 = pneg %p82
      %p170 = pneg %p79
      %p171 = pneg %p108
      %p172 = pneg %p105
      %s173 = smul.u32 8, %s14
      %p174 = scmp.lt.s32.totalorder %s173, 15
      %s175 = scalar_select %p174, %s173, 15
      %s176 = smul.addr %s175, 4
      %s177 = scalar_lea.vmem %s3, %s176
      %s178 = smul.u32 8, %s14
      %p179 = scmp.lt.s32.totalorder %s178, 15
      %s180 = scalar_select %p179, %s178, 15
      %s181 = smul.addr %s180, 4
      %s182 = scalar_lea.vmem %s0, %s181
      %s183 = smul.u32 8, %s14
      %s184 = smul.u32 8, %s14
      %p185 = scmp.lt.s32.totalorder %s184, 15
      %s186 = scalar_select %p185, %s184, 15
      %s187 = smul.addr %s186, 4
      %s188 = scalar_lea.vmem %s2, %s187
      %s189 = smul.u32 8, %s14
      %s190 = smul.u32 8, %s14
      %p191 = scmp.lt.s32.totalorder %s190, 15
      %s192 = scalar_select %p191, %s190, 15
      %s193 = smul.addr %s192, 4
      %s194 = scalar_lea.vmem %s3, %s193
      %s195 = smul.u32 8, %s14
      %v196 = vld [vmem:[%s182] sm:$0xf]
      %v197 = vld [vmem:[%s182 + $0x4] sm:$0xf]
      %v198 = vld [vmem:[%s182 + $0x8] sm:$0xf]
      %v199 = vld [vmem:[%s182 + $0xc] sm:$0xf]
      %v200 = vld [vmem:[%s182 + $0x10] sm:$0xf]
      %v201 = vld [vmem:[%s182 + $0x14] sm:$0xf]
      %v202 = vld [vmem:[%s182 + $0x18] sm:$0xf]
      %v203 = vld [vmem:[%s182 + $0x1c] sm:$0xf]
      %v204 = vunpack.c.l.bf16 %v196
      %v205 = vunpack.c.l.bf16 %v197
      %v206 = vunpack.c.l.bf16 %v198
      %v207 = vunpack.c.l.bf16 %v199
      %v208 = vunpack.c.l.bf16 %v200
      %v209 = vunpack.c.l.bf16 %v201
      %v210 = vunpack.c.l.bf16 %v202
      %v211 = vunpack.c.l.bf16 %v203
      %v212 = vld [vmem:[%s1] sm:$0x1]
      %v213 = vlaneseq
      %v214 = vshrl.u32 %v213, 7
      %v215 = vsub.s32 0, %v214
      %v216 = vrot.slane %v212, %v215
      %v217 = vmul.f32 %v204, %v216
      %v218 = vmul.f32 %v205, %v216
      %v219 = vmul.f32 %v206, %v216
      %v220 = vmul.f32 %v207, %v216
      %v221 = vmul.f32 %v208, %v216
      %v222 = vmul.f32 %v209, %v216
      %v223 = vmul.f32 %v210, %v216
      %v224 = vmul.f32 %v211, %v216
      %v225 = vld [vmem:[%s1 + $0x1] sm:$0x1]
      %v226 = vlaneseq
      %v227 = vshrl.u32 %v226, 7
      %v228 = vsub.s32 0, %v227
      %v229 = vrot.slane %v225, %v228
      %v230 = vadd.f32 %v217, %v229
      %v231 = vadd.f32 %v218, %v229
      %v232 = vadd.f32 %v219, %v229
      %v233 = vadd.f32 %v220, %v229
      %v234 = vadd.f32 %v221, %v229
      %v235 = vadd.f32 %v222, %v229
      %v236 = vadd.f32 %v223, %v229
      %v237 = vadd.f32 %v224, %v229
      %v238 = vld [vmem:[%s188] sm:$0xf]
      %v239 = vld [vmem:[%s188 + $0x4] sm:$0xf]
      %v240 = vld [vmem:[%s188 + $0x8] sm:$0xf]
      %v241 = vld [vmem:[%s188 + $0xc] sm:$0xf]
      %v242 = vld [vmem:[%s188 + $0x10] sm:$0xf]
      %v243 = vld [vmem:[%s188 + $0x14] sm:$0xf]
      %v244 = vld [vmem:[%s188 + $0x18] sm:$0xf]
      %v245 = vld [vmem:[%s188 + $0x1c] sm:$0xf]
      %v246 = vunpack.c.l.bf16 %v238
      %v247 = vunpack.c.l.bf16 %v239
      %v248 = vunpack.c.l.bf16 %v240
      %v249 = vunpack.c.l.bf16 %v241
      %v250 = vunpack.c.l.bf16 %v242
      %v251 = vunpack.c.l.bf16 %v243
      %v252 = vunpack.c.l.bf16 %v244
      %v253 = vunpack.c.l.bf16 %v245
      %v254 = vld [vmem:[%s1 + $0x2] sm:$0x1]
      %v255 = vlaneseq
      %v256 = vshrl.u32 %v255, 7
      %v257 = vsub.s32 0, %v256
      %v258 = vrot.slane %v254, %v257
      %v259 = vmul.f32 %v246, %v258
      %v260 = vmul.f32 %v247, %v258
      %v261 = vmul.f32 %v248, %v258
      %v262 = vmul.f32 %v249, %v258
      %v263 = vmul.f32 %v250, %v258
      %v264 = vmul.f32 %v251, %v258
      %v265 = vmul.f32 %v252, %v258
      %v266 = vmul.f32 %v253, %v258
      %v267 = vld [vmem:[%s1 + $0x3] sm:$0x1]
      %v268 = vlaneseq
      %v269 = vshrl.u32 %v268, 7
      %v270 = vsub.s32 0, %v269
      %v271 = vrot.slane %v267, %v270
      %v272 = vadd.f32 %v259, %v271
      %v273 = vadd.f32 %v260, %v271
      %v274 = vadd.f32 %v261, %v271
      %v275 = vadd.f32 %v262, %v271
      %v276 = vadd.f32 %v263, %v271
      %v277 = vadd.f32 %v264, %v271
      %v278 = vadd.f32 %v265, %v271
      %v279 = vadd.f32 %v266, %v271
      %v280 = vadd.f32 %v230, %v272
      %v281 = vadd.f32 %v231, %v273
      %v282 = vadd.f32 %v232, %v274
      %v283 = vadd.f32 %v233, %v275
      %v284 = vadd.f32 %v234, %v276
      %v285 = vadd.f32 %v235, %v277
      %v286 = vadd.f32 %v236, %v278
      %v287 = vadd.f32 %v237, %v279
      %v288 = vmax.f32 %v280, 0.0
      %v289 = vmax.f32 %v281, 0.0
      %v290 = vmax.f32 %v282, 0.0
      %v291 = vmax.f32 %v283, 0.0
      %v292 = vmax.f32 %v284, 0.0
      %v293 = vmax.f32 %v285, 0.0
      %v294 = vmax.f32 %v286, 0.0
      %v295 = vmax.f32 %v287, 0.0
      %v296 = vpack.c.bf16 %v289, %v288
      %v297 = vpack.c.bf16 %v291, %v290
      %v298 = vpack.c.bf16 %v293, %v292
      %v299 = vpack.c.bf16 %v295, %v294
      %v304 = vunpack.c.l.b16 %v296
      %v305 = vunpack.c.h.b16 %v296
      %v306 = vunpack.c.l.b16 %v297
      %v307 = vunpack.c.h.b16 %v297
      %v308 = vunpack.c.l.b16 %v298
      %v309 = vunpack.c.h.b16 %v298
      %v310 = vunpack.c.l.b16 %v299
      %v311 = vunpack.c.h.b16 %v299
      %v312 = vpack.c.b16 %v304, %v304
      %v313 = vpack.c.b16 %v305, %v305
      %v314 = vpack.c.b16 %v306, %v306
      %v315 = vpack.c.b16 %v307, %v307
      %v316 = vpack.c.b16 %v308, %v308
      %v317 = vpack.c.b16 %v309, %v309
      %v318 = vpack.c.b16 %v310, %v310
      %v319 = vpack.c.b16 %v311, %v311
      %328 = vst [vmem:[%s194] sm:$0xf] %v312
      %329 = vst [vmem:[%s194 + $0x4] sm:$0xf] %v313
      %330 = vst [vmem:[%s194 + $0x8] sm:$0xf] %v314
      %331 = vst [vmem:[%s194 + $0xc] sm:$0xf] %v315
      %332 = vst [vmem:[%s194 + $0x10] sm:$0xf] %v316
      %333 = vst [vmem:[%s194 + $0x14] sm:$0xf] %v317
      %334 = vst [vmem:[%s194 + $0x18] sm:$0xf] %v318
      %335 = vst [vmem:[%s194 + $0x1c] sm:$0xf] %v319
      %s336 = smul.u32 8, %s14
      %p337 = scmp.lt.s32.totalorder %s336, 15
      %s338 = scalar_select %p337, %s336, 15
      %s339 = smul.addr %s338, 4
      %s340 = scalar_lea.vmem %s3, %s339
      // Predicated region
      $region33: #{basic_block_forward.7} parent=31 // pred_check
        %p341 = pneg %p105
      $region34: #{basic_block_forward.7} parent=31 // pred_check_branch
        %343 = sbr.rel (%p341) target = $region36
      $region35: #{basic_block_forward.7} parent=31 // pred_region
        %s344 = smul.u32 8, %s14
      $region36: #{basic_block_forward.7} parent=31 // pred_fallthru
        _
    $region32: #{basic_block_forward.7} parent=5 // pred_fallthru
      _
    %p345 = scmp.le.s32.totalorder 2, %s9
    // Predicated region
    $region37: #{basic_block_forward.7} parent=5 // pred_check
      %p346 = pneg %p345
    $region38: #{basic_block_forward.7} parent=5 // pred_check_branch
      %348 = sbr.rel (%p346) target = $region40
    $region39: #{basic_block_forward.7} parent=5 // pred_region
      %s349 = ssub.s32 %s9, 2
      // Predicated region
      $region41: #{basic_block_forward.7} parent=39 // pred_check
        %p350 = pneg %p111
      $region42: #{basic_block_forward.7} parent=39 // pred_check_branch
        %352 = sbr.rel (%p350) target = $region44
      $region43: #{basic_block_forward.7} parent=39 // pred_region
        %s353 = smul.u32 8, %s15
        %p354 = scmp.lt.s32.totalorder %s353, 15
        %s355 = scalar_select %p354, %s353, 15
        %s356 = smul.addr %s355, 4
        %s357 = scalar_lea.vmem %s3, %s356
      $region44: #{basic_block_forward.7} parent=39 // pred_fallthru
        _
    $region40: #{basic_block_forward.7} parent=5 // pred_fallthru
      _
  $region6: #{basic_block_forward.7} parent=0 // loop_footer
    %s13 = sadd.s32 1, %s9
  $region7: #{basic_block_forward.7} parent=0 // loop_footer_branch
    %8 = sbr.rel target = $region3
  $region8: #{basic_block_forward.7} parent=0 // loop_exit
    _

</llo_original>
